<compile_context>
chip_gen: v6e
topology: v6e:2x2x1
jax: 0.10.0
libtpu: 0.0.40
codegen_flags: <defaults>
</compile_context>

<pallas_src>
import numpy as np
import jax
import jax.numpy as jnp
from jax import lax
from jax.experimental import pallas as pl
from jax.experimental.pallas import tpu as pltpu

# ------------------------------ static config -------------------------------
IN_SHAPE = (4, 16, 16)     # (C, H, W); the PyTorch module is fed NCHW batches
FILTERS  = [8, 16]
KERNELS  = [3, 3]
LAT_DIM  = 32
BATCH    = 2
POOL     = 2               # MaxPool2d(2)
HALF     = 128             # lanes per y-parity half (input) / per pool-phase quarter (output)


def _layer_dims(c_in, h, w, k):
    pad = k - 2                                          # ConvModule: padding = k - 2
    hc, wc = h + 2 * pad - k + 1, w + 2 * pad - k + 1    # conv output (stride 1)
    return dict(c_in=c_in, h=h, w=w, k=k, pad=pad, hc=hc, wc=wc,
                ho=hc // POOL, wo=wc // POOL, hp=h + 2 * pad, wp=w + 2 * pad)


# --------------------------- host-side weight packing -----------------------
def _pack_conv_weight(w_hwio, dims, c_out, out_xpad):
    """Scatter an HWIO conv weight into two block-structured (256, 512) bf16
    matrices so that conv + 2x2-pool-phase split becomes two MXU matmuls.

    Packed-input lane layout (one row per padded y-pair): qy*HALF + xpad*c_in + ci
    Conv-output lane layout  (one row per pooled y):
        (py*2+px)*HALF + (out_xpad + xo)*c_out + co
    out_xpad folds the NEXT layer's x-padding offset into this layer's output,
    so the downstream repack stores are 128-lane aligned.
    """
    k, _, c_in, _ = (int(s) for s in w_hwio.shape)
    wo, wp = dims["wo"], dims["wp"]
    assert k <= 3, "two-matmul row-pair scheme needs kernel size <= 3"
    assert wp * c_in <= HALF
    assert (out_xpad + wo) * c_out <= HALF
    wbd = np.zeros((2, 2 * HALF, 4 * HALF), np.float32)
    w_np = np.asarray(w_hwio, np.float32)
    for py in range(2):
        for dy in range(k):
            sy, qy = divmod(py + dy, 2)                  # sy picks which matrix
            for px in range(2):
                for dx in range(k):
                    for xo in range(wo):
                        xp = POOL * xo + px + dx         # padded input column
                        icol = qy * HALF + xp * c_in
                        ocol = (py * 2 + px) * HALF + (out_xpad + xo) * c_out
                        wbd[sy, icol:icol + c_in, ocol:ocol + c_out] = w_np[dy, dx]
    return jnp.asarray(wbd[0], jnp.bfloat16), jnp.asarray(wbd[1], jnp.bfloat16)


def _pack_bias(b, wo, out_xpad):
    b_np = np.asarray(b, np.float32)
    c_out = b_np.shape[0]
    bt = np.zeros((1, 4 * HALF), np.float32)
    tile = np.tile(b_np, wo)
    for q in range(4):                                   # same value in all 4 quarters
        off = q * HALF + out_xpad * c_out
        bt[0, off:off + wo * c_out] = tile               # padding lanes stay exactly 0
    return jnp.asarray(bt)


def _pack_linear(l1_w, l1_b, c2, h2, w2, lat):
    """Flatten the final linear weight to (h2*128, 128) bf16: rows follow the
    kernel's activation layout (yo-major, lane = xo*c2 + co, zero pad-rows) with
    torch Flatten's (C, H, W) ordering folded in; output N padded to 128 lanes."""
    assert w2 * c2 <= HALF and lat <= HALF
    wn = np.asarray(l1_w, np.float32)                    # (c2*h2*w2, lat)
    lw = np.zeros((h2 * HALF, HALF), np.float32)
    for y in range(h2):
        for x in range(w2):
            for c in range(c2):
                lw[y * HALF + x * c2 + c, :lat] = wn[c * h2 * w2 + y * w2 + x, :]
    lb = np.zeros((1, HALF), np.float32)
    lb[0, :lat] = np.asarray(l1_b, np.float32)
    return jnp.asarray(lw, jnp.bfloat16), jnp.asarray(lb)


def _pack_input(x_nchw, dims):
    """NCHW -> two bf16 LHS slabs (A, B), each (ho*n, 256).
    Row-pair lane layout: qy*HALF + xpad*c + ci (lanes wp*c..HALF-1 stay zero).
    Slab rows are pooled-y-major / sample-minor so batch folds into matmul M;
    slab B is the one-row-pair-shifted copy so both LHS loads start at sublane 0."""
    n = x_nchw.shape[0]
    pad, ho, hp, wp, c = dims["pad"], dims["ho"], dims["hp"], dims["wp"], dims["c_in"]
    t = jnp.transpose(x_nchw, (0, 2, 3, 1)).astype(jnp.float32)     # NHWC
    t = jnp.pad(t, ((0, 0), (pad, pad), (pad, pad), (0, 0)))
    t = t.reshape(n, hp, wp * c)
    t = jnp.pad(t, ((0, 0), (0, 0), (0, HALF - wp * c)))
    rows = t.reshape(n, hp // 2, 2 * HALF)               # (n, r1, 256) row-pairs
    xa = jnp.transpose(rows[:, 0:ho, :], (1, 0, 2)).reshape(ho * n, 2 * HALF)
    xb = jnp.transpose(rows[:, 1:ho + 1, :], (1, 0, 2)).reshape(ho * n, 2 * HALF)
    return xa.astype(jnp.bfloat16), xb.astype(jnp.bfloat16)


# --------------------------------- kernel -----------------------------------
def _elu(v):
    """ELU(alpha=1). Negative branch is a cancellation-free expm1 built from
    exp/log (Kahan's formula); the log argument is guarded so the unselected
    branch never produces 0/0."""
    neg = jnp.maximum(jnp.minimum(v, 0.0), -60.0)
    u = jnp.exp(neg)
    safe_log = jnp.log(jnp.where(u == 1.0, jnp.e, u))
    em1 = jnp.where(u == 1.0, neg, (u - 1.0) * neg / safe_log)
    return jnp.where(v > 0.0, v, em1)


def _make_kernel(n, dims1, dims2):
    ho1, ho2 = dims1["ho"], dims2["ho"]
    r2 = dims2["hp"] // 2
    pad2 = dims2["pad"]

    def conv_pool(lhs_a, lhs_b, wa_ref, wb_ref, bt_ref):
        # conv + bias as two lane-dense bf16 MXU matmuls (f32 accumulation) ...
        acc = jnp.dot(lhs_a, wa_ref[...], preferred_element_type=jnp.float32)
        acc = acc + jnp.dot(lhs_b, wb_ref[...], preferred_element_type=jnp.float32)
        acc = acc + bt_ref[...]
        # ... MaxPool2d(2) == max over the 4 vreg-aligned 128-lane quarters, then ELU
        m = jnp.maximum(jnp.maximum(acc[:, 0:HALF], acc[:, HALF:2 * HALF]),
                        jnp.maximum(acc[:, 2 * HALF:3 * HALF], acc[:, 3 * HALF:4 * HALF]))
        return _elu(m)                                   # (M, 128) f32

    def kernel(xa_ref, xb_ref, w1a_ref, w1b_ref, b1_ref,
               w2a_ref, w2b_ref, b2_ref, lw_ref, lb_ref,
               o_ref, x2_ref, flat_ref):
        # conv module 1: M = n*ho1 rows (pooled-y-major, sample-minor)
        act1 = conv_pool(xa_ref[...], xb_ref[...], w1a_ref, w1b_ref, b1_ref)

        # repack act1 into conv2's zero-padded row-pair slab (r2*n, 256):
        # 128-lane-aligned stores of n rows each; x-padding was already folded
        # into layer 1's output layout, so rows drop in at lane offset 0/128.
        zrow = jnp.zeros((n, HALF), jnp.float32)
        x2_ref[pl.ds(0, n), pl.ds(0, HALF)] = zrow                    # padded y = 0
        x2_ref[pl.ds((r2 - 1) * n, n), pl.ds(HALF, HALF)] = zrow      # padded y = hp2-1
        for yp in range(ho1):                                         # static unroll
            rr, half = divmod(yp + pad2, 2)
            x2_ref[pl.ds(rr * n, n), pl.ds(half * HALF, HALF)] = act1[yp * n:(yp + 1) * n, :]

        # conv module 2: A = row pairs 0..ho2-1, B = row pairs 1..ho2 (contiguous)
        a2 = x2_ref[pl.ds(0, ho2 * n), :].astype(jnp.bfloat16)
        b2 = x2_ref[pl.ds(n, ho2 * n), :].astype(jnp.bfloat16)
        act2 = conv_pool(a2, b2, w2a_ref, w2b_ref, b2_ref)            # (n*ho2, 128)

        # flatten: lay the per-pooled-y row groups side by side -> (n, ho2*128)
        for yo in range(ho2):                                         # static unroll
            flat_ref[:, pl.ds(yo * HALF, HALF)] = act2[yo * n:(yo + 1) * n, :]

        # final linear as ONE lane-dense (n, 512) @ (512, 128) matmul
        out = jnp.dot(flat_ref[...].astype(jnp.bfloat16), lw_ref[...],
                      preferred_element_type=jnp.float32) + lb_ref[...]
        o_ref[...] = out                                              # (n, 128)

    return kernel


def build_cnn_encoder(params, in_shape, lat_dim):
    """Pre-pack parameters into kernel layouts; return a jitted forward(x_nchw)."""
    assert len(params["convs"]) == 2, "fused kernel is specialized to 2 conv layers"
    c0, h0, w0 = in_shape
    (w1, b1), (w2, b2) = params["convs"]
    c1, c2 = int(w1.shape[3]), int(w2.shape[3])
    dims1 = _layer_dims(c0, h0, w0, int(w1.shape[0]))
    dims2 = _layer_dims(c1, dims1["ho"], dims1["wo"], int(w2.shape[0]))
    for d in (dims1, dims2):
        assert d["hp"] % 2 == 0 and d["hc"] % 2 == 0 and d["wc"] % 2 == 0

    # layer-1 output columns carry layer-2's x-padding offset; layer-2's do not.
    w1a, w1b = _pack_conv_weight(w1, dims1, c1, out_xpad=dims2["pad"])
    w2a, w2b = _pack_conv_weight(w2, dims2, c2, out_xpad=0)
    b1t = _pack_bias(b1, dims1["wo"], out_xpad=dims2["pad"])
    b2t = _pack_bias(b2, dims2["wo"], out_xpad=0)
    lw, lb = _pack_linear(params["l1_w"], params["l1_b"],
                          c2, dims2["ho"], dims2["wo"], lat_dim)

    ho1, ho2 = dims1["ho"], dims2["ho"]
    r2 = dims2["hp"] // 2
    iw, ow = 2 * HALF, 4 * HALF

    def _full(shape):
        return pl.BlockSpec(shape, lambda i: (0,) * len(shape))

    def forward(x_nchw):
        n = x_nchw.shape[0]
        xa, xb = _pack_input(x_nchw, dims1)              # tiny XLA glue, bf16 slabs
        kernel = _make_kernel(n, dims1, dims2)
        out = pl.pallas_call(
            kernel,
            out_shape=jax.ShapeDtypeStruct((n, HALF), jnp.float32),
            grid=(1,),                                   # batch folded into matmul M
            in_specs=[
                _full((ho1 * n, iw)), _full((ho1 * n, iw)),
                _full((iw, ow)), _full((iw, ow)), _full((1, ow)),
                _full((iw, ow)), _full((iw, ow)), _full((1, ow)),
                _full((ho2 * HALF, HALF)), _full((1, HALF)),
            ],
            out_specs=pl.BlockSpec((n, HALF), lambda i: (0, 0)),
            scratch_shapes=[pltpu.VMEM((r2 * n, iw), jnp.float32),     # conv2 row pairs
                            pltpu.VMEM((n, ho2 * HALF), jnp.float32)], # flattened acts
            compiler_params=pltpu.CompilerParams(
                dimension_semantics=("arbitrary",)),
        )(xa, xb, w1a, w1b, b1t, w2a, w2b, b2t, lw, lb)
        return out[:, :lat_dim]                          # drop the 128-lane output pad

    return jax.jit(forward)


# --------------------------- pure-XLA reference ------------------------------
def reference_forward(x_nchw, params):
    """Pure-JAX/XLA reference of the PyTorch forward (eval mode, f32 HIGHEST)."""
    t = jnp.transpose(x_nchw, (0, 2, 3, 1)).astype(jnp.float32)
    for w_hwio, b in params["convs"]:
        pad = int(w_hwio.shape[0]) - 2
        t = lax.conv_general_dilated(
            t, w_hwio, window_strides=(1, 1), padding=((pad, pad), (pad, pad)),
            dimension_numbers=("NHWC", "HWIO", "NHWC"),
            precision=lax.Precision.HIGHEST) + b
        t = lax.reduce_window(t, -jnp.inf, lax.max,
                              (1, POOL, POOL, 1), (1, POOL, POOL, 1), "VALID")
        t = jnp.where(t > 0.0, t, jnp.expm1(t))
        # TODO(synk): use_norm (BatchNorm2d) and dropout>0 paths not implemented;
        # the module defaults used here (use_norm=False, dropout=0) make them identity.
    n = t.shape[0]
    flat = jnp.transpose(t, (0, 3, 1, 2)).reshape(n, -1)       # torch (C, H, W) order
    return jnp.dot(flat, params["l1_w"],
                   precision=lax.Precision.HIGHEST) + params["l1_b"]


# ----------------------------------- main ------------------------------------
if __name__ == "__main__":
    key = jax.random.PRNGKey(0)
    c0, h0, w0 = IN_SHAPE
    (k1, k2), (f1, f2) = KERNELS, FILTERS

    key, kw1, kb1, kw2, kb2, kwl, kbl, kx = jax.random.split(key, 8)
    # Conv weights kept in HWIO; a real torch Conv2d weight (OIHW) would be
    # converted with w.transpose(2, 3, 1, 0) before packing.
    w1 = jax.random.normal(kw1, (k1, k1, c0, f1), jnp.float32) * 0.1
    b1 = jax.random.normal(kb1, (f1,), jnp.float32) * 0.2
    w2 = jax.random.normal(kw2, (k2, k2, f1, f2), jnp.float32) * 0.1
    b2 = jax.random.normal(kb2, (f2,), jnp.float32) * 0.2

    d1 = _layer_dims(c0, h0, w0, k1)
    d2 = _layer_dims(f1, d1["ho"], d1["wo"], k2)
    flat_dim = f2 * d2["ho"] * d2["wo"]                        # torch Flatten size
    # l1 weight stored as (flat_dim, lat_dim) with rows in torch (C, H, W) flatten
    # order (i.e. torch_linear.weight.T); bias as-is.
    l1_w = jax.random.normal(kwl, (flat_dim, LAT_DIM), jnp.float32) * 0.05
    l1_b = jax.random.normal(kbl, (LAT_DIM,), jnp.float32) * 0.2

    params = {"convs": [(w1, b1), (w2, b2)], "l1_w": l1_w, "l1_b": l1_b}
    forward = build_cnn_encoder(params, IN_SHAPE, LAT_DIM)

    x = jax.random.normal(kx, (BATCH,) + IN_SHAPE, jnp.float32)   # NCHW input

    out = jax.block_until_ready(forward(x))
    assert out.shape == (BATCH, LAT_DIM) and out.dtype == jnp.float32
    assert bool(jnp.all(jnp.isfinite(out)))

    # Correctness check against the pure-XLA f32 reference; tolerance sized for the
    # bf16 weight/activation MXU path (estimated |err| <~ 1.5e-2 worst element).
    ref = jax.block_until_ready(reference_forward(x, params))
    np.testing.assert_allclose(np.asarray(out), np.asarray(ref),
                               rtol=2e-2, atol=2e-2)
    print("KERNEL_OK")
</pallas_src>

<mosaic_0001>
module attributes {stable_mosaic.version = 11 : i64} {
  func.func @kernel(%arg0: i32, %arg1: memref<16x256xbf16, #tpu.memory_space<vmem>>, %arg2: memref<16x256xbf16, #tpu.memory_space<vmem>>, %arg3: memref<256x512xbf16, #tpu.memory_space<vmem>>, %arg4: memref<256x512xbf16, #tpu.memory_space<vmem>>, %arg5: memref<1x512xf32, #tpu.memory_space<vmem>>, %arg6: memref<256x512xbf16, #tpu.memory_space<vmem>>, %arg7: memref<256x512xbf16, #tpu.memory_space<vmem>>, %arg8: memref<1x512xf32, #tpu.memory_space<vmem>>, %arg9: memref<512x128xbf16, #tpu.memory_space<vmem>>, %arg10: memref<1x128xf32, #tpu.memory_space<vmem>>, %arg11: memref<2x128xf32, #tpu.memory_space<vmem>>, %arg12: memref<10x256xf32, #tpu.memory_space<vmem>>, %arg13: memref<2x512xf32, #tpu.memory_space<vmem>>) attributes {dimension_semantics = [#tpu.dimension_semantics<arbitrary>], iteration_bounds = array<i64: 1>, scalar_prefetch = 0 : i64, scratch_operands = 2 : i64, tpu.core_type = #tpu.core_type<tc>, window_params = [{pipeline_mode = #tpu.pipeline_mode<synchronous>, transform_indices = @transform_0, window_bounds = array<i64: 16, 256>}, {pipeline_mode = #tpu.pipeline_mode<synchronous>, transform_indices = @transform_1, window_bounds = array<i64: 16, 256>}, {pipeline_mode = #tpu.pipeline_mode<synchronous>, transform_indices = @transform_2, window_bounds = array<i64: 256, 512>}, {pipeline_mode = #tpu.pipeline_mode<synchronous>, transform_indices = @transform_3, window_bounds = array<i64: 256, 512>}, {pipeline_mode = #tpu.pipeline_mode<synchronous>, transform_indices = @transform_4, window_bounds = array<i64: 1, 512>}, {pipeline_mode = #tpu.pipeline_mode<synchronous>, transform_indices = @transform_5, window_bounds = array<i64: 256, 512>}, {pipeline_mode = #tpu.pipeline_mode<synchronous>, transform_indices = @transform_6, window_bounds = array<i64: 256, 512>}, {pipeline_mode = #tpu.pipeline_mode<synchronous>, transform_indices = @transform_7, window_bounds = array<i64: 1, 512>}, {pipeline_mode = #tpu.pipeline_mode<synchronous>, transform_indices = @transform_8, window_bounds = array<i64: 512, 128>}, {pipeline_mode = #tpu.pipeline_mode<synchronous>, transform_indices = @transform_9, window_bounds = array<i64: 1, 128>}, {pipeline_mode = #tpu.pipeline_mode<synchronous>, transform_indices = @transform_10, window_bounds = array<i64: 2, 128>}]} {
    %c0 = arith.constant 0 : index
    %c0_0 = arith.constant 0 : index
    %0 = vector.load %arg1[%c0, %c0_0] : memref<16x256xbf16, #tpu.memory_space<vmem>>, vector<16x256xbf16>
    %c0_1 = arith.constant 0 : index
    %c0_2 = arith.constant 0 : index
    %1 = vector.load %arg2[%c0_1, %c0_2] : memref<16x256xbf16, #tpu.memory_space<vmem>>, vector<16x256xbf16>
    %c0_3 = arith.constant 0 : index
    %c0_4 = arith.constant 0 : index
    %2 = vector.load %arg3[%c0_3, %c0_4] : memref<256x512xbf16, #tpu.memory_space<vmem>>, vector<256x512xbf16>
    %cst = arith.constant dense<0.000000e+00> : vector<16x512xf32>
    %3 = tpu.matmul %0, %2, %cst {dimension_numbers = #tpu.dot_dimension_numbers<[1], [0], [0], [1], [0, 0, 1, 1], [], []>} : vector<16x256xbf16>, vector<256x512xbf16>, vector<16x512xf32> -> vector<16x512xf32>
    %c0_5 = arith.constant 0 : index
    %c0_6 = arith.constant 0 : index
    %4 = vector.load %arg4[%c0_5, %c0_6] : memref<256x512xbf16, #tpu.memory_space<vmem>>, vector<256x512xbf16>
    %cst_7 = arith.constant dense<0.000000e+00> : vector<16x512xf32>
    %5 = tpu.matmul %1, %4, %cst_7 {dimension_numbers = #tpu.dot_dimension_numbers<[1], [0], [0], [1], [0, 0, 1, 1], [], []>} : vector<16x256xbf16>, vector<256x512xbf16>, vector<16x512xf32> -> vector<16x512xf32>
    %6 = arith.addf %3, %5 : vector<16x512xf32>
    %c0_8 = arith.constant 0 : index
    %c0_9 = arith.constant 0 : index
    %7 = vector.load %arg5[%c0_8, %c0_9] : memref<1x512xf32, #tpu.memory_space<vmem>>, vector<1x512xf32>
    %8 = vector.broadcast %7 : vector<1x512xf32> to vector<16x512xf32>
    %9 = arith.addf %6, %8 : vector<16x512xf32>
    %10 = vector.extract_strided_slice %9 {offsets = [0, 0], sizes = [16, 128], strides = [1, 1]} : vector<16x512xf32> to vector<16x128xf32>
    %11 = vector.extract_strided_slice %9 {offsets = [0, 128], sizes = [16, 128], strides = [1, 1]} : vector<16x512xf32> to vector<16x128xf32>
    %12 = arith.maximumf %10, %11 : vector<16x128xf32>
    %13 = vector.extract_strided_slice %9 {offsets = [0, 256], sizes = [16, 128], strides = [1, 1]} : vector<16x512xf32> to vector<16x128xf32>
    %14 = vector.extract_strided_slice %9 {offsets = [0, 384], sizes = [16, 128], strides = [1, 1]} : vector<16x512xf32> to vector<16x128xf32>
    %15 = arith.maximumf %13, %14 : vector<16x128xf32>
    %16 = arith.maximumf %12, %15 : vector<16x128xf32>
    %cst_10 = arith.constant 0.000000e+00 : f32
    %17 = vector.broadcast %cst_10 : f32 to vector<16x128xf32>
    %18 = arith.minimumf %16, %17 : vector<16x128xf32>
    %cst_11 = arith.constant -6.000000e+01 : f32
    %19 = vector.broadcast %cst_11 : f32 to vector<16x128xf32>
    %20 = arith.maximumf %18, %19 : vector<16x128xf32>
    %21 = math.exp %20 : vector<16x128xf32>
    %cst_12 = arith.constant 1.000000e+00 : f32
    %22 = vector.broadcast %cst_12 : f32 to vector<16x128xf32>
    %23 = arith.cmpf oeq, %21, %22 : vector<16x128xf32>
    %cst_13 = arith.constant 2.71828175 : f32
    %24 = vector.broadcast %cst_13 : f32 to vector<16x128xf32>
    %25 = arith.select %23, %24, %21 : vector<16x128xi1>, vector<16x128xf32>
    %26 = math.log %25 : vector<16x128xf32>
    %cst_14 = arith.constant 1.000000e+00 : f32
    %27 = vector.broadcast %cst_14 : f32 to vector<16x128xf32>
    %28 = arith.cmpf oeq, %21, %27 : vector<16x128xf32>
    %cst_15 = arith.constant 1.000000e+00 : f32
    %29 = vector.broadcast %cst_15 : f32 to vector<16x128xf32>
    %30 = arith.subf %21, %29 : vector<16x128xf32>
    %31 = arith.mulf %30, %20 : vector<16x128xf32>
    %32 = arith.divf %31, %26 : vector<16x128xf32>
    %33 = arith.select %28, %20, %32 : vector<16x128xi1>, vector<16x128xf32>
    %cst_16 = arith.constant 0.000000e+00 : f32
    %34 = vector.broadcast %cst_16 : f32 to vector<16x128xf32>
    %35 = arith.cmpf ogt, %16, %34 : vector<16x128xf32>
    %36 = arith.select %35, %16, %33 : vector<16x128xi1>, vector<16x128xf32>
    %cst_17 = arith.constant 0.000000e+00 : f32
    %37 = vector.broadcast %cst_17 : f32 to vector<2x128xf32>
    %c0_18 = arith.constant 0 : index
    %c0_19 = arith.constant 0 : index
    %38 = vector.load %arg12[%c0_18, %c0_19] : memref<10x256xf32, #tpu.memory_space<vmem>>, vector<2x128xf32>
    tpu.vector_store %arg12[%c0_18, %c0_19], %37 {strides = array<i32>} : memref<10x256xf32, #tpu.memory_space<vmem>>, vector<2x128xf32>,
    %c8 = arith.constant 8 : index
    %c128 = arith.constant 128 : index
    %39 = vector.load %arg12[%c8, %c128] : memref<10x256xf32, #tpu.memory_space<vmem>>, vector<2x128xf32>
    tpu.vector_store %arg12[%c8, %c128], %37 {strides = array<i32>} : memref<10x256xf32, #tpu.memory_space<vmem>>, vector<2x128xf32>,
    %40 = vector.extract_strided_slice %36 {offsets = [0, 0], sizes = [2, 128], strides = [1, 1]} : vector<16x128xf32> to vector<2x128xf32>
    %c0_20 = arith.constant 0 : index
    %c128_21 = arith.constant 128 : index
    %41 = vector.load %arg12[%c0_20, %c128_21] : memref<10x256xf32, #tpu.memory_space<vmem>>, vector<2x128xf32>
    tpu.vector_store %arg12[%c0_20, %c128_21], %40 {strides = array<i32>} : memref<10x256xf32, #tpu.memory_space<vmem>>, vector<2x128xf32>,
    %42 = vector.extract_strided_slice %36 {offsets = [2, 0], sizes = [2, 128], strides = [1, 1]} : vector<16x128xf32> to vector<2x128xf32>
    %c2 = arith.constant 2 : index
    %c0_22 = arith.constant 0 : index
    %43 = vector.load %arg12[%c2, %c0_22] : memref<10x256xf32, #tpu.memory_space<vmem>>, vector<2x128xf32>
    tpu.vector_store %arg12[%c2, %c0_22], %42 {strides = array<i32>} : memref<10x256xf32, #tpu.memory_space<vmem>>, vector<2x128xf32>,
    %44 = vector.extract_strided_slice %36 {offsets = [4, 0], sizes = [2, 128], strides = [1, 1]} : vector<16x128xf32> to vector<2x128xf32>
    %c2_23 = arith.constant 2 : index
    %c128_24 = arith.constant 128 : index
    %45 = vector.load %arg12[%c2_23, %c128_24] : memref<10x256xf32, #tpu.memory_space<vmem>>, vector<2x128xf32>
    tpu.vector_store %arg12[%c2_23, %c128_24], %44 {strides = array<i32>} : memref<10x256xf32, #tpu.memory_space<vmem>>, vector<2x128xf32>,
    %46 = vector.extract_strided_slice %36 {offsets = [6, 0], sizes = [2, 128], strides = [1, 1]} : vector<16x128xf32> to vector<2x128xf32>
    %c4 = arith.constant 4 : index
    %c0_25 = arith.constant 0 : index
    %47 = vector.load %arg12[%c4, %c0_25] : memref<10x256xf32, #tpu.memory_space<vmem>>, vector<2x128xf32>
    tpu.vector_store %arg12[%c4, %c0_25], %46 {strides = array<i32>} : memref<10x256xf32, #tpu.memory_space<vmem>>, vector<2x128xf32>,
    %48 = vector.extract_strided_slice %36 {offsets = [8, 0], sizes = [2, 128], strides = [1, 1]} : vector<16x128xf32> to vector<2x128xf32>
    %c4_26 = arith.constant 4 : index
    %c128_27 = arith.constant 128 : index
    %49 = vector.load %arg12[%c4_26, %c128_27] : memref<10x256xf32, #tpu.memory_space<vmem>>, vector<2x128xf32>
    tpu.vector_store %arg12[%c4_26, %c128_27], %48 {strides = array<i32>} : memref<10x256xf32, #tpu.memory_space<vmem>>, vector<2x128xf32>,
    %50 = vector.extract_strided_slice %36 {offsets = [10, 0], sizes = [2, 128], strides = [1, 1]} : vector<16x128xf32> to vector<2x128xf32>
    %c6 = arith.constant 6 : index
    %c0_28 = arith.constant 0 : index
    %51 = vector.load %arg12[%c6, %c0_28] : memref<10x256xf32, #tpu.memory_space<vmem>>, vector<2x128xf32>
    tpu.vector_store %arg12[%c6, %c0_28], %50 {strides = array<i32>} : memref<10x256xf32, #tpu.memory_space<vmem>>, vector<2x128xf32>,
    %52 = vector.extract_strided_slice %36 {offsets = [12, 0], sizes = [2, 128], strides = [1, 1]} : vector<16x128xf32> to vector<2x128xf32>
    %c6_29 = arith.constant 6 : index
    %c128_30 = arith.constant 128 : index
    %53 = vector.load %arg12[%c6_29, %c128_30] : memref<10x256xf32, #tpu.memory_space<vmem>>, vector<2x128xf32>
    tpu.vector_store %arg12[%c6_29, %c128_30], %52 {strides = array<i32>} : memref<10x256xf32, #tpu.memory_space<vmem>>, vector<2x128xf32>,
    %54 = vector.extract_strided_slice %36 {offsets = [14, 0], sizes = [2, 128], strides = [1, 1]} : vector<16x128xf32> to vector<2x128xf32>
    %c8_31 = arith.constant 8 : index
    %c0_32 = arith.constant 0 : index
    %55 = vector.load %arg12[%c8_31, %c0_32] : memref<10x256xf32, #tpu.memory_space<vmem>>, vector<2x128xf32>
    tpu.vector_store %arg12[%c8_31, %c0_32], %54 {strides = array<i32>} : memref<10x256xf32, #tpu.memory_space<vmem>>, vector<2x128xf32>,
    %c0_33 = arith.constant 0 : index
    %c0_34 = arith.constant 0 : index
    %56 = vector.load %arg12[%c0_33, %c0_34] : memref<10x256xf32, #tpu.memory_space<vmem>>, vector<8x256xf32>
    %57 = arith.truncf %56 : vector<8x256xf32> to vector<8x256xbf16>
    %c2_35 = arith.constant 2 : index
    %c0_36 = arith.constant 0 : index
    %58 = vector.load %arg12[%c2_35, %c0_36] : memref<10x256xf32, #tpu.memory_space<vmem>>, vector<8x256xf32>
    %59 = arith.truncf %58 : vector<8x256xf32> to vector<8x256xbf16>
    %c0_37 = arith.constant 0 : index
    %c0_38 = arith.constant 0 : index
    %60 = vector.load %arg6[%c0_37, %c0_38] : memref<256x512xbf16, #tpu.memory_space<vmem>>, vector<256x512xbf16>
    %cst_39 = arith.constant dense<0.000000e+00> : vector<8x512xf32>
    %61 = tpu.matmul %57, %60, %cst_39 {dimension_numbers = #tpu.dot_dimension_numbers<[1], [0], [0], [1], [0, 0, 1, 1], [], []>} : vector<8x256xbf16>, vector<256x512xbf16>, vector<8x512xf32> -> vector<8x512xf32>
    %c0_40 = arith.constant 0 : index
    %c0_41 = arith.constant 0 : index
    %62 = vector.load %arg7[%c0_40, %c0_41] : memref<256x512xbf16, #tpu.memory_space<vmem>>, vector<256x512xbf16>
    %cst_42 = arith.constant dense<0.000000e+00> : vector<8x512xf32>
    %63 = tpu.matmul %59, %62, %cst_42 {dimension_numbers = #tpu.dot_dimension_numbers<[1], [0], [0], [1], [0, 0, 1, 1], [], []>} : vector<8x256xbf16>, vector<256x512xbf16>, vector<8x512xf32> -> vector<8x512xf32>
    %64 = arith.addf %61, %63 : vector<8x512xf32>
    %c0_43 = arith.constant 0 : index
    %c0_44 = arith.constant 0 : index
    %65 = vector.load %arg8[%c0_43, %c0_44] : memref<1x512xf32, #tpu.memory_space<vmem>>, vector<1x512xf32>
    %66 = vector.broadcast %65 : vector<1x512xf32> to vector<8x512xf32>
    %67 = arith.addf %64, %66 : vector<8x512xf32>
    %68 = vector.extract_strided_slice %67 {offsets = [0, 0], sizes = [8, 128], strides = [1, 1]} : vector<8x512xf32> to vector<8x128xf32>
    %69 = vector.extract_strided_slice %67 {offsets = [0, 128], sizes = [8, 128], strides = [1, 1]} : vector<8x512xf32> to vector<8x128xf32>
    %70 = arith.maximumf %68, %69 : vector<8x128xf32>
    %71 = vector.extract_strided_slice %67 {offsets = [0, 256], sizes = [8, 128], strides = [1, 1]} : vector<8x512xf32> to vector<8x128xf32>
    %72 = vector.extract_strided_slice %67 {offsets = [0, 384], sizes = [8, 128], strides = [1, 1]} : vector<8x512xf32> to vector<8x128xf32>
    %73 = arith.maximumf %71, %72 : vector<8x128xf32>
    %74 = arith.maximumf %70, %73 : vector<8x128xf32>
    %cst_45 = arith.constant 0.000000e+00 : f32
    %75 = vector.broadcast %cst_45 : f32 to vector<8x128xf32>
    %76 = arith.minimumf %74, %75 : vector<8x128xf32>
    %cst_46 = arith.constant -6.000000e+01 : f32
    %77 = vector.broadcast %cst_46 : f32 to vector<8x128xf32>
    %78 = arith.maximumf %76, %77 : vector<8x128xf32>
    %79 = math.exp %78 : vector<8x128xf32>
    %cst_47 = arith.constant 1.000000e+00 : f32
    %80 = vector.broadcast %cst_47 : f32 to vector<8x128xf32>
    %81 = arith.cmpf oeq, %79, %80 : vector<8x128xf32>
    %cst_48 = arith.constant 2.71828175 : f32
    %82 = vector.broadcast %cst_48 : f32 to vector<8x128xf32>
    %83 = arith.select %81, %82, %79 : vector<8x128xi1>, vector<8x128xf32>
    %84 = math.log %83 : vector<8x128xf32>
    %cst_49 = arith.constant 1.000000e+00 : f32
    %85 = vector.broadcast %cst_49 : f32 to vector<8x128xf32>
    %86 = arith.cmpf oeq, %79, %85 : vector<8x128xf32>
    %cst_50 = arith.constant 1.000000e+00 : f32
    %87 = vector.broadcast %cst_50 : f32 to vector<8x128xf32>
    %88 = arith.subf %79, %87 : vector<8x128xf32>
    %89 = arith.mulf %88, %78 : vector<8x128xf32>
    %90 = arith.divf %89, %84 : vector<8x128xf32>
    %91 = arith.select %86, %78, %90 : vector<8x128xi1>, vector<8x128xf32>
    %cst_51 = arith.constant 0.000000e+00 : f32
    %92 = vector.broadcast %cst_51 : f32 to vector<8x128xf32>
    %93 = arith.cmpf ogt, %74, %92 : vector<8x128xf32>
    %94 = arith.select %93, %74, %91 : vector<8x128xi1>, vector<8x128xf32>
    %95 = vector.extract_strided_slice %94 {offsets = [0, 0], sizes = [2, 128], strides = [1, 1]} : vector<8x128xf32> to vector<2x128xf32>
    %c0_52 = arith.constant 0 : index
    %c0_53 = arith.constant 0 : index
    %96 = vector.load %arg13[%c0_52, %c0_53] : memref<2x512xf32, #tpu.memory_space<vmem>>, vector<2x128xf32>
    tpu.vector_store %arg13[%c0_52, %c0_53], %95 {strides = array<i32>} : memref<2x512xf32, #tpu.memory_space<vmem>>, vector<2x128xf32>,
    %97 = vector.extract_strided_slice %94 {offsets = [2, 0], sizes = [2, 128], strides = [1, 1]} : vector<8x128xf32> to vector<2x128xf32>
    %c0_54 = arith.constant 0 : index
    %c128_55 = arith.constant 128 : index
    %98 = vector.load %arg13[%c0_54, %c128_55] : memref<2x512xf32, #tpu.memory_space<vmem>>, vector<2x128xf32>
    tpu.vector_store %arg13[%c0_54, %c128_55], %97 {strides = array<i32>} : memref<2x512xf32, #tpu.memory_space<vmem>>, vector<2x128xf32>,
    %99 = vector.extract_strided_slice %94 {offsets = [4, 0], sizes = [2, 128], strides = [1, 1]} : vector<8x128xf32> to vector<2x128xf32>
    %c0_56 = arith.constant 0 : index
    %c256 = arith.constant 256 : index
    %100 = vector.load %arg13[%c0_56, %c256] : memref<2x512xf32, #tpu.memory_space<vmem>>, vector<2x128xf32>
    tpu.vector_store %arg13[%c0_56, %c256], %99 {strides = array<i32>} : memref<2x512xf32, #tpu.memory_space<vmem>>, vector<2x128xf32>,
    %101 = vector.extract_strided_slice %94 {offsets = [6, 0], sizes = [2, 128], strides = [1, 1]} : vector<8x128xf32> to vector<2x128xf32>
    %c0_57 = arith.constant 0 : index
    %c384 = arith.constant 384 : index
    %102 = vector.load %arg13[%c0_57, %c384] : memref<2x512xf32, #tpu.memory_space<vmem>>, vector<2x128xf32>
    tpu.vector_store %arg13[%c0_57, %c384], %101 {strides = array<i32>} : memref<2x512xf32, #tpu.memory_space<vmem>>, vector<2x128xf32>,
    %c0_58 = arith.constant 0 : index
    %c0_59 = arith.constant 0 : index
    %103 = vector.load %arg13[%c0_58, %c0_59] : memref<2x512xf32, #tpu.memory_space<vmem>>, vector<2x512xf32>
    %104 = arith.truncf %103 : vector<2x512xf32> to vector<2x512xbf16>
    %c0_60 = arith.constant 0 : index
    %c0_61 = arith.constant 0 : index
    %105 = vector.load %arg9[%c0_60, %c0_61] : memref<512x128xbf16, #tpu.memory_space<vmem>>, vector<512x128xbf16>
    %cst_62 = arith.constant dense<0.000000e+00> : vector<2x128xf32>
    %106 = tpu.matmul %104, %105, %cst_62 {dimension_numbers = #tpu.dot_dimension_numbers<[1], [0], [0], [1], [0, 0, 1, 1], [], []>} : vector<2x512xbf16>, vector<512x128xbf16>, vector<2x128xf32> -> vector<2x128xf32>
    %c0_63 = arith.constant 0 : index
    %c0_64 = arith.constant 0 : index
    %107 = vector.load %arg10[%c0_63, %c0_64] : memref<1x128xf32, #tpu.memory_space<vmem>>, vector<1x128xf32>
    %108 = vector.broadcast %107 : vector<1x128xf32> to vector<2x128xf32>
    %109 = arith.addf %106, %108 : vector<2x128xf32>
    %c0_65 = arith.constant 0 : index
    %c0_66 = arith.constant 0 : index
    %110 = vector.load %arg11[%c0_65, %c0_66] : memref<2x128xf32, #tpu.memory_space<vmem>>, vector<2x128xf32>
    tpu.vector_store %arg11[%c0_65, %c0_66], %109 {strides = array<i32>} : memref<2x128xf32, #tpu.memory_space<vmem>>, vector<2x128xf32>,
    return
  }
  func.func @transform_0(%arg0: i32) -> (i32, i32) {
    %c0_i32 = arith.constant 0 : i32
    %c0_i32_0 = arith.constant 0 : i32
    %c0_i32_1 = arith.constant 0 : i32
    return %c0_i32, %c0_i32_0 : i32, i32
  }
  func.func @transform_1(%arg0: i32) -> (i32, i32) {
    %c0_i32 = arith.constant 0 : i32
    %c0_i32_0 = arith.constant 0 : i32
    %c0_i32_1 = arith.constant 0 : i32
    return %c0_i32, %c0_i32_0 : i32, i32
  }
  func.func @transform_2(%arg0: i32) -> (i32, i32) {
    %c0_i32 = arith.constant 0 : i32
    %c0_i32_0 = arith.constant 0 : i32
    %c0_i32_1 = arith.constant 0 : i32
    return %c0_i32, %c0_i32_0 : i32, i32
  }
  func.func @transform_3(%arg0: i32) -> (i32, i32) {
    %c0_i32 = arith.constant 0 : i32
    %c0_i32_0 = arith.constant 0 : i32
    %c0_i32_1 = arith.constant 0 : i32
    return %c0_i32, %c0_i32_0 : i32, i32
  }
  func.func @transform_4(%arg0: i32) -> (i32, i32) {
    %c0_i32 = arith.constant 0 : i32
    %c0_i32_0 = arith.constant 0 : i32
    %c0_i32_1 = arith.constant 0 : i32
    return %c0_i32, %c0_i32_0 : i32, i32
  }
  func.func @transform_5(%arg0: i32) -> (i32, i32) {
    %c0_i32 = arith.constant 0 : i32
    %c0_i32_0 = arith.constant 0 : i32
    %c0_i32_1 = arith.constant 0 : i32
    return %c0_i32, %c0_i32_0 : i32, i32
  }
  func.func @transform_6(%arg0: i32) -> (i32, i32) {
    %c0_i32 = arith.constant 0 : i32
    %c0_i32_0 = arith.constant 0 : i32
    %c0_i32_1 = arith.constant 0 : i32
    return %c0_i32, %c0_i32_0 : i32, i32
  }
  func.func @transform_7(%arg0: i32) -> (i32, i32) {
    %c0_i32 = arith.constant 0 : i32
    %c0_i32_0 = arith.constant 0 : i32
    %c0_i32_1 = arith.constant 0 : i32
    return %c0_i32, %c0_i32_0 : i32, i32
  }
  func.func @transform_8(%arg0: i32) -> (i32, i32) {
    %c0_i32 = arith.constant 0 : i32
    %c0_i32_0 = arith.constant 0 : i32
    %c0_i32_1 = arith.constant 0 : i32
    return %c0_i32, %c0_i32_0 : i32, i32
  }
  func.func @transform_9(%arg0: i32) -> (i32, i32) {
    %c0_i32 = arith.constant 0 : i32
    %c0_i32_0 = arith.constant 0 : i32
    %c0_i32_1 = arith.constant 0 : i32
    return %c0_i32, %c0_i32_0 : i32, i32
  }
  func.func @transform_10(%arg0: i32) -> (i32, i32) {
    %c0_i32 = arith.constant 0 : i32
    %c0_i32_0 = arith.constant 0 : i32
    %c0_i32_1 = arith.constant 0 : i32
    return %c0_i32, %c0_i32_0 : i32, i32
  }
}

</mosaic_0001>

<llo_original>
// kernel: forward.1
$region0: #{forward.1}
  #allocation0 [shape = 'u32[]', space=smem, size = 0x4, offset = 0x4, fixed_abs, tag = 'smem constant byte address 0x4 - core index']
  #allocation1 [shape = 'u32[144,128]{1,0:T(1,128)}', space=vmem, size = 0x12000, scoped, tag = 'internal scratch']
  #allocation2 [shape = 'f32[10,256]{1,0:T(8,128)}', space=vmem, size = 0x4000, scoped, tag = 'scratch operand']
  #allocation3 [shape = 'f32[2,512]{1,0:T(2,128)}', space=vmem, size = 0x1000, scoped, tag = 'scratch operand']
  %s0 = inlined_call_operand.vmem [shape: bf16[16,256], index: 0, kind: input, shape index: {}]
  %s1 = inlined_call_operand.vmem [shape: bf16[16,256], index: 1, kind: input, shape index: {}]
  %s2 = inlined_call_operand.hbm [shape: bf16[256,512], index: 2, kind: input, shape index: {}]
  %s3 = inlined_call_operand.hbm [shape: bf16[256,512], index: 3, kind: input, shape index: {}]
  %s4 = inlined_call_operand.vmem [shape: f32[1,512], index: 4, kind: input, shape index: {}]
  %s5 = inlined_call_operand.hbm [shape: bf16[256,512], index: 5, kind: input, shape index: {}]
  %s6 = inlined_call_operand.vmem [shape: bf16[256,512], index: 6, kind: input, shape index: {}]
  %s7 = inlined_call_operand.vmem [shape: f32[1,512], index: 7, kind: input, shape index: {}]
  %s8 = inlined_call_operand.hbm [shape: bf16[512,128], index: 8, kind: input, shape index: {}]
  %s9 = inlined_call_operand.vmem [shape: f32[1,128], index: 9, kind: input, shape index: {}]
  %s10 = inlined_call_operand.hbm [shape: f32[2,128], index: 10, kind: output, shape index: {}]
  %s11 = sld [smem:[#allocation0]]
  $region66: #{forward.1} parent=0
    _
  %s13 = ssub.s32 1, %s11
  %s14 = scalar_select 0, %s13, %s11
  $region1: #{forward.1} parent=0
    #allocation4 [shape = 'u8[262144]{0}', space=vmem, size = 0x40000, scoped, tag = 'input window, operand 2, single buffered']
    #allocation5 [shape = 's32[1]{0}', space=sflag, size = 0x4, scoped, tag = 'scoped memory for forward.1']
    #allocation6 [shape = 's32[1]{0}', space=sflag, size = 0x4, scoped, tag = 'scoped memory for forward.1']
    #allocation7 [shape = 'u8[262144]{0}', space=vmem, size = 0x40000, scoped, tag = 'input window, operand 3, single buffered']
    #allocation8 [shape = 's32[1]{0}', space=sflag, size = 0x4, scoped, tag = 'scoped memory for forward.1']
    #allocation9 [shape = 'u8[262144]{0}', space=vmem, size = 0x40000, scoped, tag = 'input window, operand 5, single buffered']
    #allocation10 [shape = 'u8[131072]{0}', space=vmem, size = 0x20000, scoped, tag = 'input window, operand 8, single buffered']
    #allocation11 [shape = 's32[1]{0}', space=sflag, size = 0x4, scoped, tag = 'scoped memory for forward.1']
    #allocation12 [shape = 'u8[1024]{0}', space=vmem, size = 0x400, scoped, tag = 'output window, operand 0, single buffered']
    %15 = vsyncpa [#allocation5], 0
    %16 = vsyncpa [#allocation8], 0
    %17 = vsyncpa [#allocation11], 0
    %18 = vsyncpa [#allocation6], 0
    // Predicated region
    $region2: #{forward.1} parent=1 // pred_check
      _
    $region3: #{forward.1} parent=1 // pred_check_branch
      %20 = sbr.rel (0) target = $region5
    $region4: #{forward.1} parent=1 // pred_region
      _
    $region5: #{forward.1} parent=1 // pred_fallthru
      _
    // Predicated region
    $region6: #{forward.1} parent=1 // pred_check
      _
    $region7: #{forward.1} parent=1 // pred_check_branch
      %22 = sbr.rel (0) target = $region9
    $region8: #{forward.1} parent=1 // pred_region
      _
    $region9: #{forward.1} parent=1 // pred_fallthru
      _
    // Predicated region
    $region10: #{forward.1} parent=1 // pred_check
      _
    $region11: #{forward.1} parent=1 // pred_check_branch
      %24 = sbr.rel (0) target = $region13
    $region12: #{forward.1} parent=1 // pred_region
      %s26 = ssub.s32 8192, 8192
      %27 = vsyncadd [#allocation5], %s26
      %s28 = sshll.u32 [#allocation4], 4
      %s29 = int_to_ptr.vmem [resolvable:$true] %s28
      %34 = dma.hbm_to_vmem [thread:$0]  %s2, 8192, %s29, [#allocation5], 256, 256, 16
    $region13: #{forward.1} parent=1 // pred_fallthru
      _
    // Predicated region
    $region14: #{forward.1} parent=1 // pred_check
      _
    $region15: #{forward.1} parent=1 // pred_check_branch
      %36 = sbr.rel (0) target = $region17
    $region16: #{forward.1} parent=1 // pred_region
      %s38 = ssub.s32 8192, 8192
      %39 = vsyncadd [#allocation8], %s38
      %s40 = sshll.u32 [#allocation7], 4
      %s41 = int_to_ptr.vmem [resolvable:$true] %s40
      %46 = dma.hbm_to_vmem [thread:$0]  %s3, 8192, %s41, [#allocation8], 256, 256, 16
    $region17: #{forward.1} parent=1 // pred_fallthru
      _
    // Predicated region
    $region18: #{forward.1} parent=1 // pred_check
      _
    $region19: #{forward.1} parent=1 // pred_check_branch
      %48 = sbr.rel (0) target = $region21
    $region20: #{forward.1} parent=1 // pred_region
      _
    $region21: #{forward.1} parent=1 // pred_fallthru
      _
    // Predicated region
    $region22: #{forward.1} parent=1 // pred_check
      _
    $region23: #{forward.1} parent=1 // pred_check_branch
      %50 = sbr.rel (0) target = $region25
    $region24: #{forward.1} parent=1 // pred_region
      %s52 = ssub.s32 8192, 8192
      %53 = vsyncadd [#allocation8], %s52
      %s54 = sshll.u32 [#allocation9], 4
      %s55 = int_to_ptr.vmem [resolvable:$true] %s54
      %60 = dma.hbm_to_vmem [thread:$0]  %s5, 8192, %s55, [#allocation8], 256, 256, 16
    $region25: #{forward.1} parent=1 // pred_fallthru
      _
    // Predicated region
    $region26: #{forward.1} parent=1 // pred_check
      _
    $region27: #{forward.1} parent=1 // pred_check_branch
      %62 = sbr.rel (0) target = $region29
    $region28: #{forward.1} parent=1 // pred_region
      _
    $region29: #{forward.1} parent=1 // pred_fallthru
      _
    // Predicated region
    $region30: #{forward.1} parent=1 // pred_check
      _
    $region31: #{forward.1} parent=1 // pred_check_branch
      %64 = sbr.rel (0) target = $region33
    $region32: #{forward.1} parent=1 // pred_region
      _
    $region33: #{forward.1} parent=1 // pred_fallthru
      _
    // Predicated region
    $region34: #{forward.1} parent=1 // pred_check
      _
    $region35: #{forward.1} parent=1 // pred_check_branch
      %66 = sbr.rel (0) target = $region37
    $region36: #{forward.1} parent=1 // pred_region
      %s68 = ssub.s32 4096, 4096
      %69 = vsyncadd [#allocation11], %s68
      %s70 = sshll.u32 [#allocation10], 4
      %s71 = int_to_ptr.vmem [resolvable:$true] %s70
      %76 = dma.hbm_to_vmem [thread:$0]  %s8, 4096, %s71, [#allocation11], 64, 64, 4
    $region37: #{forward.1} parent=1 // pred_fallthru
      _
    // Predicated region
    $region38: #{forward.1} parent=1 // pred_check
      _
    $region39: #{forward.1} parent=1 // pred_check_branch
      %78 = sbr.rel (0) target = $region41
    $region40: #{forward.1} parent=1 // pred_region
      _
    $region41: #{forward.1} parent=1 // pred_fallthru
      _
    // Predicated region
    $region42: #{forward.1} parent=1 // pred_check
      _
    $region43: #{forward.1} parent=1 // pred_check_branch
      %80 = sbr.rel (0) target = $region45
    $region44: #{forward.1} parent=1 // pred_region
      %81 = dma.done [#allocation5], 8192
    $region45: #{forward.1} parent=1 // pred_fallthru
      _
    // Predicated region
    $region46: #{forward.1} parent=1 // pred_check
      _
    $region47: #{forward.1} parent=1 // pred_check_branch
      %83 = sbr.rel (0) target = $region49
    $region48: #{forward.1} parent=1 // pred_region
      %84 = dma.done [#allocation8], 8192
    $region49: #{forward.1} parent=1 // pred_fallthru
      _
    // Predicated region
    $region50: #{forward.1} parent=1 // pred_check
      _
    $region51: #{forward.1} parent=1 // pred_check_branch
      %86 = sbr.rel (0) target = $region53
    $region52: #{forward.1} parent=1 // pred_region
      %87 = dma.done [#allocation8], 8192
    $region53: #{forward.1} parent=1 // pred_fallthru
      _
    // Predicated region
    $region54: #{forward.1} parent=1 // pred_check
      _
    $region55: #{forward.1} parent=1 // pred_check_branch
      %89 = sbr.rel (0) target = $region57
    $region56: #{forward.1} parent=1 // pred_region
      %90 = dma.done [#allocation11], 4096
    $region57: #{forward.1} parent=1 // pred_fallthru
      _
    %v92 = vld [vmem:[%s0] sm:$0xff]
    %v93 = vld [vmem:[%s0 + $0x8] sm:$0xff]
    %v94 = vld [vmem:[%s1] sm:$0xff]
    %v95 = vld [vmem:[%s1 + $0x8] sm:$0xff]
    %v96 = vld [vmem:[#allocation4] sm:$0xff]
    %v97 = vld [vmem:[#allocation4 + $0x8] sm:$0xff]
    %v98 = vld [vmem:[#allocation4 + $0x10] sm:$0xff]
    %v99 = vld [vmem:[#allocation4 + $0x18] sm:$0xff]
    %v100 = vld [vmem:[#allocation4 + $0x20] sm:$0xff]
    %v101 = vld [vmem:[#allocation4 + $0x28] sm:$0xff]
    %v102 = vld [vmem:[#allocation4 + $0x30] sm:$0xff]
    %v103 = vld [vmem:[#allocation4 + $0x38] sm:$0xff]
    %v104 = vld [vmem:[#allocation4 + $0x40] sm:$0xff]
    %v105 = vld [vmem:[#allocation4 + $0x48] sm:$0xff]
    %v106 = vld [vmem:[#allocation4 + $0x50] sm:$0xff]
    %v107 = vld [vmem:[#allocation4 + $0x58] sm:$0xff]
    %v108 = vld [vmem:[#allocation4 + $0x60] sm:$0xff]
    %v109 = vld [vmem:[#allocation4 + $0x68] sm:$0xff]
    %v110 = vld [vmem:[#allocation4 + $0x70] sm:$0xff]
    %v111 = vld [vmem:[#allocation4 + $0x78] sm:$0xff]
    %v112 = vld [vmem:[#allocation4 + $0x80] sm:$0xff]
    %v113 = vld [vmem:[#allocation4 + $0x88] sm:$0xff]
    %v114 = vld [vmem:[#allocation4 + $0x90] sm:$0xff]
    %v115 = vld [vmem:[#allocation4 + $0x98] sm:$0xff]
    %v116 = vld [vmem:[#allocation4 + $0xa0] sm:$0xff]
    %v117 = vld [vmem:[#allocation4 + $0xa8] sm:$0xff]
    %v118 = vld [vmem:[#allocation4 + $0xb0] sm:$0xff]
    %v119 = vld [vmem:[#allocation4 + $0xb8] sm:$0xff]
    %v120 = vld [vmem:[#allocation4 + $0xc0] sm:$0xff]
    %v121 = vld [vmem:[#allocation4 + $0xc8] sm:$0xff]
    %v122 = vld [vmem:[#allocation4 + $0xd0] sm:$0xff]
    %v123 = vld [vmem:[#allocation4 + $0xd8] sm:$0xff]
    %v124 = vld [vmem:[#allocation4 + $0xe0] sm:$0xff]
    %v125 = vld [vmem:[#allocation4 + $0xe8] sm:$0xff]
    %v126 = vld [vmem:[#allocation4 + $0xf0] sm:$0xff]
    %v127 = vld [vmem:[#allocation4 + $0xf8] sm:$0xff]
    %v128 = vld [vmem:[#allocation4 + $0x100] sm:$0xff]
    %v129 = vld [vmem:[#allocation4 + $0x108] sm:$0xff]
    %v130 = vld [vmem:[#allocation4 + $0x110] sm:$0xff]
    %v131 = vld [vmem:[#allocation4 + $0x118] sm:$0xff]
    %v132 = vld [vmem:[#allocation4 + $0x120] sm:$0xff]
    %v133 = vld [vmem:[#allocation4 + $0x128] sm:$0xff]
    %v134 = vld [vmem:[#allocation4 + $0x130] sm:$0xff]
    %v135 = vld [vmem:[#allocation4 + $0x138] sm:$0xff]
    %v136 = vld [vmem:[#allocation4 + $0x140] sm:$0xff]
    %v137 = vld [vmem:[#allocation4 + $0x148] sm:$0xff]
    %v138 = vld [vmem:[#allocation4 + $0x150] sm:$0xff]
    %v139 = vld [vmem:[#allocation4 + $0x158] sm:$0xff]
    %v140 = vld [vmem:[#allocation4 + $0x160] sm:$0xff]
    %v141 = vld [vmem:[#allocation4 + $0x168] sm:$0xff]
    %v142 = vld [vmem:[#allocation4 + $0x170] sm:$0xff]
    %v143 = vld [vmem:[#allocation4 + $0x178] sm:$0xff]
    %v144 = vld [vmem:[#allocation4 + $0x180] sm:$0xff]
    %v145 = vld [vmem:[#allocation4 + $0x188] sm:$0xff]
    %v146 = vld [vmem:[#allocation4 + $0x190] sm:$0xff]
    %v147 = vld [vmem:[#allocation4 + $0x198] sm:$0xff]
    %v148 = vld [vmem:[#allocation4 + $0x1a0] sm:$0xff]
    %v149 = vld [vmem:[#allocation4 + $0x1a8] sm:$0xff]
    %v150 = vld [vmem:[#allocation4 + $0x1b0] sm:$0xff]
    %v151 = vld [vmem:[#allocation4 + $0x1b8] sm:$0xff]
    %v152 = vld [vmem:[#allocation4 + $0x1c0] sm:$0xff]
    %v153 = vld [vmem:[#allocation4 + $0x1c8] sm:$0xff]
    %v154 = vld [vmem:[#allocation4 + $0x1d0] sm:$0xff]
    %v155 = vld [vmem:[#allocation4 + $0x1d8] sm:$0xff]
    %v156 = vld [vmem:[#allocation4 + $0x1e0] sm:$0xff]
    %v157 = vld [vmem:[#allocation4 + $0x1e8] sm:$0xff]
    %v158 = vld [vmem:[#allocation4 + $0x1f0] sm:$0xff]
    %v159 = vld [vmem:[#allocation4 + $0x1f8] sm:$0xff]
    %v160 = vld [vmem:[#allocation7] sm:$0xff]
    %v161 = vld [vmem:[#allocation7 + $0x8] sm:$0xff]
    %v162 = vld [vmem:[#allocation7 + $0x10] sm:$0xff]
    %v163 = vld [vmem:[#allocation7 + $0x18] sm:$0xff]
    %v164 = vld [vmem:[#allocation7 + $0x20] sm:$0xff]
    %v165 = vld [vmem:[#allocation7 + $0x28] sm:$0xff]
    %v166 = vld [vmem:[#allocation7 + $0x30] sm:$0xff]
    %v167 = vld [vmem:[#allocation7 + $0x38] sm:$0xff]
    %v168 = vld [vmem:[#allocation7 + $0x40] sm:$0xff]
    %v169 = vld [vmem:[#allocation7 + $0x48] sm:$0xff]
    %v170 = vld [vmem:[#allocation7 + $0x50] sm:$0xff]
    %v171 = vld [vmem:[#allocation7 + $0x58] sm:$0xff]
    %v172 = vld [vmem:[#allocation7 + $0x60] sm:$0xff]
    %v173 = vld [vmem:[#allocation7 + $0x68] sm:$0xff]
    %v174 = vld [vmem:[#allocation7 + $0x70] sm:$0xff]
    %v175 = vld [vmem:[#allocation7 + $0x78] sm:$0xff]
    %v176 = vld [vmem:[#allocation7 + $0x80] sm:$0xff]
    %v177 = vld [vmem:[#allocation7 + $0x88] sm:$0xff]
    %v178 = vld [vmem:[#allocation7 + $0x90] sm:$0xff]
    %v179 = vld [vmem:[#allocation7 + $0x98] sm:$0xff]
    %v180 = vld [vmem:[#allocation7 + $0xa0] sm:$0xff]
    %v181 = vld [vmem:[#allocation7 + $0xa8] sm:$0xff]
    %v182 = vld [vmem:[#allocation7 + $0xb0] sm:$0xff]
    %v183 = vld [vmem:[#allocation7 + $0xb8] sm:$0xff]
    %v184 = vld [vmem:[#allocation7 + $0xc0] sm:$0xff]
    %v185 = vld [vmem:[#allocation7 + $0xc8] sm:$0xff]
    %v186 = vld [vmem:[#allocation7 + $0xd0] sm:$0xff]
    %v187 = vld [vmem:[#allocation7 + $0xd8] sm:$0xff]
    %v188 = vld [vmem:[#allocation7 + $0xe0] sm:$0xff]
    %v189 = vld [vmem:[#allocation7 + $0xe8] sm:$0xff]
    %v190 = vld [vmem:[#allocation7 + $0xf0] sm:$0xff]
    %v191 = vld [vmem:[#allocation7 + $0xf8] sm:$0xff]
    %v192 = vld [vmem:[#allocation7 + $0x100] sm:$0xff]
    %v193 = vld [vmem:[#allocation7 + $0x108] sm:$0xff]
    %v194 = vld [vmem:[#allocation7 + $0x110] sm:$0xff]
    %v195 = vld [vmem:[#allocation7 + $0x118] sm:$0xff]
    %v196 = vld [vmem:[#allocation7 + $0x120] sm:$0xff]
    %v197 = vld [vmem:[#allocation7 + $0x128] sm:$0xff]
    %v198 = vld [vmem:[#allocation7 + $0x130] sm:$0xff]
    %v199 = vld [vmem:[#allocation7 + $0x138] sm:$0xff]
    %v200 = vld [vmem:[#allocation7 + $0x140] sm:$0xff]
    %v201 = vld [vmem:[#allocation7 + $0x148] sm:$0xff]
    %v202 = vld [vmem:[#allocation7 + $0x150] sm:$0xff]
    %v203 = vld [vmem:[#allocation7 + $0x158] sm:$0xff]
    %v204 = vld [vmem:[#allocation7 + $0x160] sm:$0xff]
    %v205 = vld [vmem:[#allocation7 + $0x168] sm:$0xff]
    %v206 = vld [vmem:[#allocation7 + $0x170] sm:$0xff]
    %v207 = vld [vmem:[#allocation7 + $0x178] sm:$0xff]
    %v208 = vld [vmem:[#allocation7 + $0x180] sm:$0xff]
    %v209 = vld [vmem:[#allocation7 + $0x188] sm:$0xff]
    %v210 = vld [vmem:[#allocation7 + $0x190] sm:$0xff]
    %v211 = vld [vmem:[#allocation7 + $0x198] sm:$0xff]
    %v212 = vld [vmem:[#allocation7 + $0x1a0] sm:$0xff]
    %v213 = vld [vmem:[#allocation7 + $0x1a8] sm:$0xff]
    %v214 = vld [vmem:[#allocation7 + $0x1b0] sm:$0xff]
    %v215 = vld [vmem:[#allocation7 + $0x1b8] sm:$0xff]
    %v216 = vld [vmem:[#allocation7 + $0x1c0] sm:$0xff]
    %v217 = vld [vmem:[#allocation7 + $0x1c8] sm:$0xff]
    %v218 = vld [vmem:[#allocation7 + $0x1d0] sm:$0xff]
    %v219 = vld [vmem:[#allocation7 + $0x1d8] sm:$0xff]
    %v220 = vld [vmem:[#allocation7 + $0x1e0] sm:$0xff]
    %v221 = vld [vmem:[#allocation7 + $0x1e8] sm:$0xff]
    %v222 = vld [vmem:[#allocation7 + $0x1f0] sm:$0xff]
    %v223 = vld [vmem:[#allocation7 + $0x1f8] sm:$0xff]
    %v226 = vunpack.c.l.b16 %v94
    %v227 = vunpack.c.h.b16 %v94
    %v228 = vunpack.c.l.b16 %v95
    %v229 = vunpack.c.h.b16 %v95
    %v230 = vpack.c.b16 %v228, %v226
    %v231 = vpack.c.b16 %v229, %v227
    %v298 = vunpack.c.l.b16 %v160
    %v299 = vunpack.c.h.b16 %v160
    %v300 = vunpack.c.l.b16 %v161
    %v301 = vunpack.c.h.b16 %v161
    %v302 = vunpack.c.l.b16 %v162
    %v303 = vunpack.c.h.b16 %v162
    %v304 = vunpack.c.l.b16 %v163
    %v305 = vunpack.c.h.b16 %v163
    %v306 = vunpack.c.l.b16 %v164
    %v307 = vunpack.c.h.b16 %v164
    %v308 = vunpack.c.l.b16 %v165
    %v309 = vunpack.c.h.b16 %v165
    %v310 = vunpack.c.l.b16 %v166
    %v311 = vunpack.c.h.b16 %v166
    %v312 = vunpack.c.l.b16 %v167
    %v313 = vunpack.c.h.b16 %v167
    %v314 = vunpack.c.l.b16 %v168
    %v315 = vunpack.c.h.b16 %v168
    %v316 = vunpack.c.l.b16 %v169
    %v317 = vunpack.c.h.b16 %v169
    %v318 = vunpack.c.l.b16 %v170
    %v319 = vunpack.c.h.b16 %v170
    %v320 = vunpack.c.l.b16 %v171
    %v321 = vunpack.c.h.b16 %v171
    %v322 = vunpack.c.l.b16 %v172
    %v323 = vunpack.c.h.b16 %v172
    %v324 = vunpack.c.l.b16 %v173
    %v325 = vunpack.c.h.b16 %v173
    %v326 = vunpack.c.l.b16 %v174
    %v327 = vunpack.c.h.b16 %v174
    %v328 = vunpack.c.l.b16 %v175
    %v329 = vunpack.c.h.b16 %v175
    %v330 = vunpack.c.l.b16 %v176
    %v331 = vunpack.c.h.b16 %v176
    %v332 = vunpack.c.l.b16 %v177
    %v333 = vunpack.c.h.b16 %v177
    %v334 = vunpack.c.l.b16 %v178
    %v335 = vunpack.c.h.b16 %v178
    %v336 = vunpack.c.l.b16 %v179
    %v337 = vunpack.c.h.b16 %v179
    %v338 = vunpack.c.l.b16 %v180
    %v339 = vunpack.c.h.b16 %v180
    %v340 = vunpack.c.l.b16 %v181
    %v341 = vunpack.c.h.b16 %v181
    %v342 = vunpack.c.l.b16 %v182
    %v343 = vunpack.c.h.b16 %v182
    %v344 = vunpack.c.l.b16 %v183
    %v345 = vunpack.c.h.b16 %v183
    %v346 = vunpack.c.l.b16 %v184
    %v347 = vunpack.c.h.b16 %v184
    %v348 = vunpack.c.l.b16 %v185
    %v349 = vunpack.c.h.b16 %v185
    %v350 = vunpack.c.l.b16 %v186
    %v351 = vunpack.c.h.b16 %v186
    %v352 = vunpack.c.l.b16 %v187
    %v353 = vunpack.c.h.b16 %v187
    %v354 = vunpack.c.l.b16 %v188
    %v355 = vunpack.c.h.b16 %v188
    %v356 = vunpack.c.l.b16 %v189
    %v357 = vunpack.c.h.b16 %v189
    %v358 = vunpack.c.l.b16 %v190
    %v359 = vunpack.c.h.b16 %v190
    %v360 = vunpack.c.l.b16 %v191
    %v361 = vunpack.c.h.b16 %v191
    %v362 = vunpack.c.l.b16 %v192
    %v363 = vunpack.c.h.b16 %v192
    %v364 = vunpack.c.l.b16 %v193
    %v365 = vunpack.c.h.b16 %v193
    %v366 = vunpack.c.l.b16 %v194
    %v367 = vunpack.c.h.b16 %v194
    %v368 = vunpack.c.l.b16 %v195
    %v369 = vunpack.c.h.b16 %v195
    %v370 = vunpack.c.l.b16 %v196
    %v371 = vunpack.c.h.b16 %v196
    %v372 = vunpack.c.l.b16 %v197
    %v373 = vunpack.c.h.b16 %v197
    %v374 = vunpack.c.l.b16 %v198
    %v375 = vunpack.c.h.b16 %v198
    %v376 = vunpack.c.l.b16 %v199
    %v377 = vunpack.c.h.b16 %v199
    %v378 = vunpack.c.l.b16 %v200
    %v379 = vunpack.c.h.b16 %v200
    %v380 = vunpack.c.l.b16 %v201
    %v381 = vunpack.c.h.b16 %v201
    %v382 = vunpack.c.l.b16 %v202
    %v383 = vunpack.c.h.b16 %v202
    %v384 = vunpack.c.l.b16 %v203
    %v385 = vunpack.c.h.b16 %v203
    %v386 = vunpack.c.l.b16 %v204
    %v387 = vunpack.c.h.b16 %v204
    %v388 = vunpack.c.l.b16 %v205
    %v389 = vunpack.c.h.b16 %v205
    %v390 = vunpack.c.l.b16 %v206
    %v391 = vunpack.c.h.b16 %v206
    %v392 = vunpack.c.l.b16 %v207
    %v393 = vunpack.c.h.b16 %v207
    %v394 = vunpack.c.l.b16 %v208
    %v395 = vunpack.c.h.b16 %v208
    %v396 = vunpack.c.l.b16 %v209
    %v397 = vunpack.c.h.b16 %v209
    %v398 = vunpack.c.l.b16 %v210
    %v399 = vunpack.c.h.b16 %v210
    %v400 = vunpack.c.l.b16 %v211
    %v401 = vunpack.c.h.b16 %v211
    %v402 = vunpack.c.l.b16 %v212
    %v403 = vunpack.c.h.b16 %v212
    %v404 = vunpack.c.l.b16 %v213
    %v405 = vunpack.c.h.b16 %v213
    %v406 = vunpack.c.l.b16 %v214
    %v407 = vunpack.c.h.b16 %v214
    %v408 = vunpack.c.l.b16 %v215
    %v409 = vunpack.c.h.b16 %v215
    %v410 = vunpack.c.l.b16 %v216
    %v411 = vunpack.c.h.b16 %v216
    %v412 = vunpack.c.l.b16 %v217
    %v413 = vunpack.c.h.b16 %v217
    %v414 = vunpack.c.l.b16 %v218
    %v415 = vunpack.c.h.b16 %v218
    %v416 = vunpack.c.l.b16 %v219
    %v417 = vunpack.c.h.b16 %v219
    %v418 = vunpack.c.l.b16 %v220
    %v419 = vunpack.c.h.b16 %v220
    %v420 = vunpack.c.l.b16 %v221
    %v421 = vunpack.c.h.b16 %v221
    %v422 = vunpack.c.l.b16 %v222
    %v423 = vunpack.c.h.b16 %v222
    %v424 = vunpack.c.l.b16 %v223
    %v425 = vunpack.c.h.b16 %v223
    %v426 = vpack.c.b16 %v302, %v298
    %v427 = vpack.c.b16 %v303, %v299
    %v428 = vpack.c.b16 %v304, %v300
    %v429 = vpack.c.b16 %v305, %v301
    %v430 = vpack.c.b16 %v310, %v306
    %v431 = vpack.c.b16 %v311, %v307
    %v432 = vpack.c.b16 %v312, %v308
    %v433 = vpack.c.b16 %v313, %v309
    %v434 = vpack.c.b16 %v318, %v314
    %v435 = vpack.c.b16 %v319, %v315
    %v436 = vpack.c.b16 %v320, %v316
    %v437 = vpack.c.b16 %v321, %v317
    %v438 = vpack.c.b16 %v326, %v322
    %v439 = vpack.c.b16 %v327, %v323
    %v440 = vpack.c.b16 %v328, %v324
    %v441 = vpack.c.b16 %v329, %v325
    %v442 = vpack.c.b16 %v334, %v330
    %v443 = vpack.c.b16 %v335, %v331
    %v444 = vpack.c.b16 %v336, %v332
    %v445 = vpack.c.b16 %v337, %v333
    %v446 = vpack.c.b16 %v342, %v338
    %v447 = vpack.c.b16 %v343, %v339
    %v448 = vpack.c.b16 %v344, %v340
    %v449 = vpack.c.b16 %v345, %v341
    %v450 = vpack.c.b16 %v350, %v346
    %v451 = vpack.c.b16 %v351, %v347
    %v452 = vpack.c.b16 %v352, %v348
    %v453 = vpack.c.b16 %v353, %v349
    %v454 = vpack.c.b16 %v358, %v354
    %v455 = vpack.c.b16 %v359, %v355
    %v456 = vpack.c.b16 %v360, %v356
    %v457 = vpack.c.b16 %v361, %v357
    %v458 = vpack.c.b16 %v366, %v362
    %v459 = vpack.c.b16 %v367, %v363
    %v460 = vpack.c.b16 %v368, %v364
    %v461 = vpack.c.b16 %v369, %v365
    %v462 = vpack.c.b16 %v374, %v370
    %v463 = vpack.c.b16 %v375, %v371
    %v464 = vpack.c.b16 %v376, %v372
    %v465 = vpack.c.b16 %v377, %v373
    %v466 = vpack.c.b16 %v382, %v378
    %v467 = vpack.c.b16 %v383, %v379
    %v468 = vpack.c.b16 %v384, %v380
    %v469 = vpack.c.b16 %v385, %v381
    %v470 = vpack.c.b16 %v390, %v386
    %v471 = vpack.c.b16 %v391, %v387
    %v472 = vpack.c.b16 %v392, %v388
    %v473 = vpack.c.b16 %v393, %v389
    %v474 = vpack.c.b16 %v398, %v394
    %v475 = vpack.c.b16 %v399, %v395
    %v476 = vpack.c.b16 %v400, %v396
    %v477 = vpack.c.b16 %v401, %v397
    %v478 = vpack.c.b16 %v406, %v402
    %v479 = vpack.c.b16 %v407, %v403
    %v480 = vpack.c.b16 %v408, %v404
    %v481 = vpack.c.b16 %v409, %v405
    %v482 = vpack.c.b16 %v414, %v410
    %v483 = vpack.c.b16 %v415, %v411
    %v484 = vpack.c.b16 %v416, %v412
    %v485 = vpack.c.b16 %v417, %v413
    %v486 = vpack.c.b16 %v422, %v418
    %v487 = vpack.c.b16 %v423, %v419
    %v488 = vpack.c.b16 %v424, %v420
    %v489 = vpack.c.b16 %v425, %v421
    %554 = vmatprep.subr.bf16.mxu0 %v455
    %555 = vmatpush1.bf16.msra.mxu0 %v454
    %556 = vmatprep.subr.bf16.mxu0 %v451
    %557 = vmatpush1.bf16.msra.mxu0 %v450
    %558 = vmatprep.subr.bf16.mxu0 %v447
    %559 = vmatpush1.bf16.msra.mxu0 %v446
    %560 = vmatprep.subr.bf16.mxu0 %v443
    %561 = vmatpush1.bf16.msra.mxu0 %v442
    %562 = vmatprep.subr.bf16.mxu0 %v439
    %563 = vmatpush1.bf16.msra.mxu0 %v438
    %564 = vmatprep.subr.bf16.mxu0 %v435
    %565 = vmatpush1.bf16.msra.mxu0 %v434
    %566 = vmatprep.subr.bf16.mxu0 %v431
    %567 = vmatpush1.bf16.msra.mxu0 %v430
    %568 = vmatprep.subr.bf16.mxu0 %v427
    %569 = vmatpush1.bf16.msra.mxu0 %v426
    %570 = vmatprep.subr.bf16.mxu0 %v487
    %571 = vmatpush2.bf16.msra.mxu0 %v486
    %572 = vmatprep.subr.bf16.mxu0 %v483
    %573 = vmatpush2.bf16.msra.mxu0 %v482
    %574 = vmatprep.subr.bf16.mxu0 %v479
    %575 = vmatpush2.bf16.msra.mxu0 %v478
    %576 = vmatprep.subr.bf16.mxu0 %v475
    %577 = vmatpush2.bf16.msra.mxu0 %v474
    %578 = vmatprep.subr.bf16.mxu0 %v471
    %579 = vmatpush2.bf16.msra.mxu0 %v470
    %580 = vmatprep.subr.bf16.mxu0 %v467
    %581 = vmatpush2.bf16.msra.mxu0 %v466
    %582 = vmatprep.subr.bf16.mxu0 %v463
    %583 = vmatpush2.bf16.msra.mxu0 %v462
    %584 = vmatprep.subr.bf16.mxu0 %v459
    %585 = vmatpush2.bf16.msra.mxu0 %v458
    %586 = vmatprep.mubr.bf16.mxu0 %v231
    %587 = vmatmul.mubr.bf16.gmra.mxu0 %v230
    %v588 = vpop.f32.mrf.mxu0
    %v589 = vadd.f32 0.0, %v588
    %v590 = vpop.f32.mrf.mxu0
    %v591 = vadd.f32 0.0, %v590
    %v592 = vpop.f32.mrf.mxu0
    %v593 = vadd.f32 0.0, %v592
    %v594 = vpop.f32.mrf.mxu0
    %v595 = vadd.f32 0.0, %v594
    %596 = vdwg.mxu0
    %597 = vmatprep.subr.bf16.mxu0 %v457
    %598 = vmatpush1.bf16.msra.mxu0 %v456
    %599 = vmatprep.subr.bf16.mxu0 %v453
    %600 = vmatpush1.bf16.msra.mxu0 %v452
    %601 = vmatprep.subr.bf16.mxu0 %v449
    %602 = vmatpush1.bf16.msra.mxu0 %v448
    %603 = vmatprep.subr.bf16.mxu0 %v445
    %604 = vmatpush1.bf16.msra.mxu0 %v444
    %605 = vmatprep.subr.bf16.mxu0 %v441
    %606 = vmatpush1.bf16.msra.mxu0 %v440
    %607 = vmatprep.subr.bf16.mxu0 %v437
    %608 = vmatpush1.bf16.msra.mxu0 %v436
    %609 = vmatprep.subr.bf16.mxu0 %v433
    %610 = vmatpush1.bf16.msra.mxu0 %v432
    %611 = vmatprep.subr.bf16.mxu0 %v429
    %612 = vmatpush1.bf16.msra.mxu0 %v428
    %613 = vmatprep.subr.bf16.mxu0 %v489
    %614 = vmatpush2.bf16.msra.mxu0 %v488
    %615 = vmatprep.subr.bf16.mxu0 %v485
    %616 = vmatpush2.bf16.msra.mxu0 %v484
    %617 = vmatprep.subr.bf16.mxu0 %v481
    %618 = vmatpush2.bf16.msra.mxu0 %v480
    %619 = vmatprep.subr.bf16.mxu0 %v477
    %620 = vmatpush2.bf16.msra.mxu0 %v476
    %621 = vmatprep.subr.bf16.mxu0 %v473
    %622 = vmatpush2.bf16.msra.mxu0 %v472
    %623 = vmatprep.subr.bf16.mxu0 %v469
    %624 = vmatpush2.bf16.msra.mxu0 %v468
    %625 = vmatprep.subr.bf16.mxu0 %v465
    %626 = vmatpush2.bf16.msra.mxu0 %v464
    %627 = vmatprep.subr.bf16.mxu0 %v461
    %628 = vmatpush2.bf16.msra.mxu0 %v460
    %629 = vmatprep.mubr.bf16.mxu0 %v231
    %630 = vmatmul.mubr.bf16.gmra.mxu0 %v230
    %v631 = vpop.f32.mrf.mxu0
    %v632 = vadd.f32 0.0, %v631
    %v633 = vpop.f32.mrf.mxu0
    %v634 = vadd.f32 0.0, %v633
    %v635 = vpop.f32.mrf.mxu0
    %v636 = vadd.f32 0.0, %v635
    %v637 = vpop.f32.mrf.mxu0
    %v638 = vadd.f32 0.0, %v637
    %639 = vdwg.mxu0
    %v642 = vunpack.c.l.b16 %v92
    %v643 = vunpack.c.h.b16 %v92
    %v644 = vunpack.c.l.b16 %v93
    %v645 = vunpack.c.h.b16 %v93
    %v646 = vpack.c.b16 %v644, %v642
    %v647 = vpack.c.b16 %v645, %v643
    %v714 = vunpack.c.l.b16 %v96
    %v715 = vunpack.c.h.b16 %v96
    %v716 = vunpack.c.l.b16 %v97
    %v717 = vunpack.c.h.b16 %v97
    %v718 = vunpack.c.l.b16 %v98
    %v719 = vunpack.c.h.b16 %v98
    %v720 = vunpack.c.l.b16 %v99
    %v721 = vunpack.c.h.b16 %v99
    %v722 = vunpack.c.l.b16 %v100
    %v723 = vunpack.c.h.b16 %v100
    %v724 = vunpack.c.l.b16 %v101
    %v725 = vunpack.c.h.b16 %v101
    %v726 = vunpack.c.l.b16 %v102
    %v727 = vunpack.c.h.b16 %v102
    %v728 = vunpack.c.l.b16 %v103
    %v729 = vunpack.c.h.b16 %v103
    %v730 = vunpack.c.l.b16 %v104
    %v731 = vunpack.c.h.b16 %v104
    %v732 = vunpack.c.l.b16 %v105
    %v733 = vunpack.c.h.b16 %v105
    %v734 = vunpack.c.l.b16 %v106
    %v735 = vunpack.c.h.b16 %v106
    %v736 = vunpack.c.l.b16 %v107
    %v737 = vunpack.c.h.b16 %v107
    %v738 = vunpack.c.l.b16 %v108
    %v739 = vunpack.c.h.b16 %v108
    %v740 = vunpack.c.l.b16 %v109
    %v741 = vunpack.c.h.b16 %v109
    %v742 = vunpack.c.l.b16 %v110
    %v743 = vunpack.c.h.b16 %v110
    %v744 = vunpack.c.l.b16 %v111
    %v745 = vunpack.c.h.b16 %v111
    %v746 = vunpack.c.l.b16 %v112
    %v747 = vunpack.c.h.b16 %v112
    %v748 = vunpack.c.l.b16 %v113
    %v749 = vunpack.c.h.b16 %v113
    %v750 = vunpack.c.l.b16 %v114
    %v751 = vunpack.c.h.b16 %v114
    %v752 = vunpack.c.l.b16 %v115
    %v753 = vunpack.c.h.b16 %v115
    %v754 = vunpack.c.l.b16 %v116
    %v755 = vunpack.c.h.b16 %v116
    %v756 = vunpack.c.l.b16 %v117
    %v757 = vunpack.c.h.b16 %v117
    %v758 = vunpack.c.l.b16 %v118
    %v759 = vunpack.c.h.b16 %v118
    %v760 = vunpack.c.l.b16 %v119
    %v761 = vunpack.c.h.b16 %v119
    %v762 = vunpack.c.l.b16 %v120
    %v763 = vunpack.c.h.b16 %v120
    %v764 = vunpack.c.l.b16 %v121
    %v765 = vunpack.c.h.b16 %v121
    %v766 = vunpack.c.l.b16 %v122
    %v767 = vunpack.c.h.b16 %v122
    %v768 = vunpack.c.l.b16 %v123
    %v769 = vunpack.c.h.b16 %v123
    %v770 = vunpack.c.l.b16 %v124
    %v771 = vunpack.c.h.b16 %v124
    %v772 = vunpack.c.l.b16 %v125
    %v773 = vunpack.c.h.b16 %v125
    %v774 = vunpack.c.l.b16 %v126
    %v775 = vunpack.c.h.b16 %v126
    %v776 = vunpack.c.l.b16 %v127
    %v777 = vunpack.c.h.b16 %v127
    %v778 = vunpack.c.l.b16 %v128
    %v779 = vunpack.c.h.b16 %v128
    %v780 = vunpack.c.l.b16 %v129
    %v781 = vunpack.c.h.b16 %v129
    %v782 = vunpack.c.l.b16 %v130
    %v783 = vunpack.c.h.b16 %v130
    %v784 = vunpack.c.l.b16 %v131
    %v785 = vunpack.c.h.b16 %v131
    %v786 = vunpack.c.l.b16 %v132
    %v787 = vunpack.c.h.b16 %v132
    %v788 = vunpack.c.l.b16 %v133
    %v789 = vunpack.c.h.b16 %v133
    %v790 = vunpack.c.l.b16 %v134
    %v791 = vunpack.c.h.b16 %v134
    %v792 = vunpack.c.l.b16 %v135
    %v793 = vunpack.c.h.b16 %v135
    %v794 = vunpack.c.l.b16 %v136
    %v795 = vunpack.c.h.b16 %v136
    %v796 = vunpack.c.l.b16 %v137
    %v797 = vunpack.c.h.b16 %v137
    %v798 = vunpack.c.l.b16 %v138
    %v799 = vunpack.c.h.b16 %v138
    %v800 = vunpack.c.l.b16 %v139
    %v801 = vunpack.c.h.b16 %v139
    %v802 = vunpack.c.l.b16 %v140
    %v803 = vunpack.c.h.b16 %v140
    %v804 = vunpack.c.l.b16 %v141
    %v805 = vunpack.c.h.b16 %v141
    %v806 = vunpack.c.l.b16 %v142
    %v807 = vunpack.c.h.b16 %v142
    %v808 = vunpack.c.l.b16 %v143
    %v809 = vunpack.c.h.b16 %v143
    %v810 = vunpack.c.l.b16 %v144
    %v811 = vunpack.c.h.b16 %v144
    %v812 = vunpack.c.l.b16 %v145
    %v813 = vunpack.c.h.b16 %v145
    %v814 = vunpack.c.l.b16 %v146
    %v815 = vunpack.c.h.b16 %v146
    %v816 = vunpack.c.l.b16 %v147
    %v817 = vunpack.c.h.b16 %v147
    %v818 = vunpack.c.l.b16 %v148
    %v819 = vunpack.c.h.b16 %v148
    %v820 = vunpack.c.l.b16 %v149
    %v821 = vunpack.c.h.b16 %v149
    %v822 = vunpack.c.l.b16 %v150
    %v823 = vunpack.c.h.b16 %v150
    %v824 = vunpack.c.l.b16 %v151
    %v825 = vunpack.c.h.b16 %v151
    %v826 = vunpack.c.l.b16 %v152
    %v827 = vunpack.c.h.b16 %v152
    %v828 = vunpack.c.l.b16 %v153
    %v829 = vunpack.c.h.b16 %v153
    %v830 = vunpack.c.l.b16 %v154
    %v831 = vunpack.c.h.b16 %v154
    %v832 = vunpack.c.l.b16 %v155
    %v833 = vunpack.c.h.b16 %v155
    %v834 = vunpack.c.l.b16 %v156
    %v835 = vunpack.c.h.b16 %v156
    %v836 = vunpack.c.l.b16 %v157
    %v837 = vunpack.c.h.b16 %v157
    %v838 = vunpack.c.l.b16 %v158
    %v839 = vunpack.c.h.b16 %v158
    %v840 = vunpack.c.l.b16 %v159
    %v841 = vunpack.c.h.b16 %v159
    %v842 = vpack.c.b16 %v718, %v714
    %v843 = vpack.c.b16 %v719, %v715
    %v844 = vpack.c.b16 %v720, %v716
    %v845 = vpack.c.b16 %v721, %v717
    %v846 = vpack.c.b16 %v726, %v722
    %v847 = vpack.c.b16 %v727, %v723
    %v848 = vpack.c.b16 %v728, %v724
    %v849 = vpack.c.b16 %v729, %v725
    %v850 = vpack.c.b16 %v734, %v730
    %v851 = vpack.c.b16 %v735, %v731
    %v852 = vpack.c.b16 %v736, %v732
    %v853 = vpack.c.b16 %v737, %v733
    %v854 = vpack.c.b16 %v742, %v738
    %v855 = vpack.c.b16 %v743, %v739
    %v856 = vpack.c.b16 %v744, %v740
    %v857 = vpack.c.b16 %v745, %v741
    %v858 = vpack.c.b16 %v750, %v746
    %v859 = vpack.c.b16 %v751, %v747
    %v860 = vpack.c.b16 %v752, %v748
    %v861 = vpack.c.b16 %v753, %v749
    %v862 = vpack.c.b16 %v758, %v754
    %v863 = vpack.c.b16 %v759, %v755
    %v864 = vpack.c.b16 %v760, %v756
    %v865 = vpack.c.b16 %v761, %v757
    %v866 = vpack.c.b16 %v766, %v762
    %v867 = vpack.c.b16 %v767, %v763
    %v868 = vpack.c.b16 %v768, %v764
    %v869 = vpack.c.b16 %v769, %v765
    %v870 = vpack.c.b16 %v774, %v770
    %v871 = vpack.c.b16 %v775, %v771
    %v872 = vpack.c.b16 %v776, %v772
    %v873 = vpack.c.b16 %v777, %v773
    %v874 = vpack.c.b16 %v782, %v778
    %v875 = vpack.c.b16 %v783, %v779
    %v876 = vpack.c.b16 %v784, %v780
    %v877 = vpack.c.b16 %v785, %v781
    %v878 = vpack.c.b16 %v790, %v786
    %v879 = vpack.c.b16 %v791, %v787
    %v880 = vpack.c.b16 %v792, %v788
    %v881 = vpack.c.b16 %v793, %v789
    %v882 = vpack.c.b16 %v798, %v794
    %v883 = vpack.c.b16 %v799, %v795
    %v884 = vpack.c.b16 %v800, %v796
    %v885 = vpack.c.b16 %v801, %v797
    %v886 = vpack.c.b16 %v806, %v802
    %v887 = vpack.c.b16 %v807, %v803
    %v888 = vpack.c.b16 %v808, %v804
    %v889 = vpack.c.b16 %v809, %v805
    %v890 = vpack.c.b16 %v814, %v810
    %v891 = vpack.c.b16 %v815, %v811
    %v892 = vpack.c.b16 %v816, %v812
    %v893 = vpack.c.b16 %v817, %v813
    %v894 = vpack.c.b16 %v822, %v818
    %v895 = vpack.c.b16 %v823, %v819
    %v896 = vpack.c.b16 %v824, %v820
    %v897 = vpack.c.b16 %v825, %v821
    %v898 = vpack.c.b16 %v830, %v826
    %v899 = vpack.c.b16 %v831, %v827
    %v900 = vpack.c.b16 %v832, %v828
    %v901 = vpack.c.b16 %v833, %v829
    %v902 = vpack.c.b16 %v838, %v834
    %v903 = vpack.c.b16 %v839, %v835
    %v904 = vpack.c.b16 %v840, %v836
    %v905 = vpack.c.b16 %v841, %v837
    %970 = vmatprep.subr.bf16.mxu0 %v871
    %971 = vmatpush1.bf16.msra.mxu0 %v870
    %972 = vmatprep.subr.bf16.mxu0 %v867
    %973 = vmatpush1.bf16.msra.mxu0 %v866
    %974 = vmatprep.subr.bf16.mxu0 %v863
    %975 = vmatpush1.bf16.msra.mxu0 %v862
    %976 = vmatprep.subr.bf16.mxu0 %v859
    %977 = vmatpush1.bf16.msra.mxu0 %v858
    %978 = vmatprep.subr.bf16.mxu0 %v855
    %979 = vmatpush1.bf16.msra.mxu0 %v854
    %980 = vmatprep.subr.bf16.mxu0 %v851
    %981 = vmatpush1.bf16.msra.mxu0 %v850
    %982 = vmatprep.subr.bf16.mxu0 %v847
    %983 = vmatpush1.bf16.msra.mxu0 %v846
    %984 = vmatprep.subr.bf16.mxu0 %v843
    %985 = vmatpush1.bf16.msra.mxu0 %v842
    %986 = vmatprep.subr.bf16.mxu0 %v903
    %987 = vmatpush2.bf16.msra.mxu0 %v902
    %988 = vmatprep.subr.bf16.mxu0 %v899
    %989 = vmatpush2.bf16.msra.mxu0 %v898
    %990 = vmatprep.subr.bf16.mxu0 %v895
    %991 = vmatpush2.bf16.msra.mxu0 %v894
    %992 = vmatprep.subr.bf16.mxu0 %v891
    %993 = vmatpush2.bf16.msra.mxu0 %v890
    %994 = vmatprep.subr.bf16.mxu0 %v887
    %995 = vmatpush2.bf16.msra.mxu0 %v886
    %996 = vmatprep.subr.bf16.mxu0 %v883
    %997 = vmatpush2.bf16.msra.mxu0 %v882
    %998 = vmatprep.subr.bf16.mxu0 %v879
    %999 = vmatpush2.bf16.msra.mxu0 %v878
    %1000 = vmatprep.subr.bf16.mxu0 %v875
    %1001 = vmatpush2.bf16.msra.mxu0 %v874
    %1002 = vmatprep.mubr.bf16.mxu0 %v647
    %1003 = vmatmul.mubr.bf16.gmra.mxu0 %v646
    %v1004 = vpop.f32.mrf.mxu0
    %v1005 = vadd.f32 %v589, %v1004
    %v1006 = vpop.f32.mrf.mxu0
    %v1007 = vadd.f32 %v591, %v1006
    %v1008 = vpop.f32.mrf.mxu0
    %v1009 = vadd.f32 %v593, %v1008
    %v1010 = vpop.f32.mrf.mxu0
    %v1011 = vadd.f32 %v595, %v1010
    %1012 = vdwg.mxu0
    %1013 = vmatprep.subr.bf16.mxu0 %v873
    %1014 = vmatpush1.bf16.msra.mxu0 %v872
    %1015 = vmatprep.subr.bf16.mxu0 %v869
    %1016 = vmatpush1.bf16.msra.mxu0 %v868
    %1017 = vmatprep.subr.bf16.mxu0 %v865
    %1018 = vmatpush1.bf16.msra.mxu0 %v864
    %1019 = vmatprep.subr.bf16.mxu0 %v861
    %1020 = vmatpush1.bf16.msra.mxu0 %v860
    %1021 = vmatprep.subr.bf16.mxu0 %v857
    %1022 = vmatpush1.bf16.msra.mxu0 %v856
    %1023 = vmatprep.subr.bf16.mxu0 %v853
    %1024 = vmatpush1.bf16.msra.mxu0 %v852
    %1025 = vmatprep.subr.bf16.mxu0 %v849
    %1026 = vmatpush1.bf16.msra.mxu0 %v848
    %1027 = vmatprep.subr.bf16.mxu0 %v845
    %1028 = vmatpush1.bf16.msra.mxu0 %v844
    %1029 = vmatprep.subr.bf16.mxu0 %v905
    %1030 = vmatpush2.bf16.msra.mxu0 %v904
    %1031 = vmatprep.subr.bf16.mxu0 %v901
    %1032 = vmatpush2.bf16.msra.mxu0 %v900
    %1033 = vmatprep.subr.bf16.mxu0 %v897
    %1034 = vmatpush2.bf16.msra.mxu0 %v896
    %1035 = vmatprep.subr.bf16.mxu0 %v893
    %1036 = vmatpush2.bf16.msra.mxu0 %v892
    %1037 = vmatprep.subr.bf16.mxu0 %v889
    %1038 = vmatpush2.bf16.msra.mxu0 %v888
    %1039 = vmatprep.subr.bf16.mxu0 %v885
    %1040 = vmatpush2.bf16.msra.mxu0 %v884
    %1041 = vmatprep.subr.bf16.mxu0 %v881
    %1042 = vmatpush2.bf16.msra.mxu0 %v880
    %1043 = vmatprep.subr.bf16.mxu0 %v877
    %1044 = vmatpush2.bf16.msra.mxu0 %v876
    %1045 = vmatprep.mubr.bf16.mxu0 %v647
    %1046 = vmatmul.mubr.bf16.gmra.mxu0 %v646
    %v1047 = vpop.f32.mrf.mxu0
    %v1048 = vadd.f32 %v632, %v1047
    %v1049 = vpop.f32.mrf.mxu0
    %v1050 = vadd.f32 %v634, %v1049
    %v1051 = vpop.f32.mrf.mxu0
    %v1052 = vadd.f32 %v636, %v1051
    %v1053 = vpop.f32.mrf.mxu0
    %v1054 = vadd.f32 %v638, %v1053
    %1055 = vdwg.mxu0
    %v1056 = vld [vmem:[%s4] sm:$0xf]
    %v1058 = vlaneseq
    %v1059 = vshrl.u32 %v1058, 7
    %v1060 = vsub.s32 0, %v1059
    %v1061 = vrot.slane %v1056, %v1060
    %v1062 = vlaneseq
    %v1063 = vshrl.u32 %v1062, 7
    %v1064 = vsub.s32 1, %v1063
    %v1065 = vrot.slane %v1056, %v1064
    %v1066 = vlaneseq
    %v1067 = vshrl.u32 %v1066, 7
    %v1068 = vsub.s32 2, %v1067
    %v1069 = vrot.slane %v1056, %v1068
    %v1070 = vlaneseq
    %v1071 = vshrl.u32 %v1070, 7
    %v1072 = vsub.s32 3, %v1071
    %v1073 = vrot.slane %v1056, %v1072
    %v1078 = vadd.f32 %v1005, %v1061
    %v1079 = vadd.f32 %v1007, %v1065
    %v1080 = vadd.f32 %v1048, %v1069
    %v1081 = vadd.f32 %v1050, %v1073
    %v1082 = vadd.f32 %v1009, %v1061
    %v1083 = vadd.f32 %v1011, %v1065
    %v1084 = vadd.f32 %v1052, %v1069
    %v1085 = vadd.f32 %v1054, %v1073
    %v1086 = vmax.f32 %v1078, %v1079
    %v1087 = vmax.f32 %v1082, %v1083
    %v1088 = vmax.f32 %v1080, %v1081
    %v1089 = vmax.f32 %v1084, %v1085
    %v1090 = vmax.f32 %v1086, %v1088
    %v1091 = vmax.f32 %v1087, %v1089
    %v1092 = vmin.f32 %v1090, 0.0
    %v1093 = vmin.f32 %v1091, 0.0
    %v1094 = vmax.f32 %v1092, -60.0
    %v1095 = vmax.f32 %v1093, -60.0
    %v1096 = vmul.f32 %v1094, 1.442695
    %v1097 = vpow.pop %v1096
    %v1098 = vmul.f32 %v1095, 1.442695
    %v1099 = vpow.pop %v1098
    %vm1100 = vcmp.eq.f32.partialorder %v1097, 1.0
    %vm1101 = vcmp.eq.f32.partialorder %v1099, 1.0
    %v1102 = vsel %vm1100, 2.7182817, %v1097
    %v1103 = vsel %vm1101, 2.7182817, %v1099
    %v1104 = vlog2.pop %v1102
    %v1105 = vmul.f32 %v1104, 0.6931472
    %v1106 = vlog2.pop %v1103
    %v1107 = vmul.f32 %v1106, 0.6931472
    %v1108 = vsub.f32 %v1097, 1.0
    %v1109 = vsub.f32 %v1099, 1.0
    %v1110 = vmul.f32 %v1108, %v1094
    %v1111 = vmul.f32 %v1109, %v1095
    %v1112 = vrcp.pop %v1105
    %v1113 = vmul.f32 %v1110, %v1112
    %v1114 = vrcp.pop %v1107
    %v1115 = vmul.f32 %v1111, %v1114
    %v1116 = vsel %vm1100, %v1094, %v1113
    %v1117 = vsel %vm1101, %v1095, %v1115
    %vm1118 = vcmp.gt.f32.partialorder %v1090, 0.0
    %vm1119 = vcmp.gt.f32.partialorder %v1091, 0.0
    %v1120 = vsel %vm1118, %v1090, %v1116
    %v1121 = vsel %vm1119, %v1091, %v1117
    %1122 = vst [vmem:[#allocation2] sm:$0x3] 0.0
    %1123 = vst [vmem:[#allocation2 + $0x18] sm:$0x3] 0.0
    %1124 = vst [vmem:[#allocation2 + $0x8] sm:$0x3] %v1120
    %1125 = vst [vmem:[#allocation2] sm:$0xc] %v1120
    %v1127 = vrot.slane %v1120, 2
    %1129 = vst [vmem:[#allocation2 + $0x8] sm:$0xc] %v1127
    %1130 = vst [vmem:[#allocation2] sm:$0x30] %v1127
    %v1132 = vrot.slane %v1121, 4
    %1134 = vst [vmem:[#allocation2 + $0x8] sm:$0x30] %v1132
    %1135 = vst [vmem:[#allocation2] sm:$0xc0] %v1132
    %v1136 = vrot.slane %v1121, 6
    %1138 = vst [vmem:[#allocation2 + $0x8] sm:$0xc0] %v1136
    %1139 = vst [vmem:[#allocation2 + $0x10] sm:$0x3] %v1136
    %v1140 = vld [vmem:[#allocation2] sm:$0xff]
    %v1141 = vld [vmem:[#allocation2 + $0x8] sm:$0xff]
    %v1142 = vpack.c.bf16 %v1140, %v1140
    %v1143 = vpack.c.bf16 %v1141, %v1141
    %v1144 = vld [vmem:[#allocation2] sm:$0xfc]
    %v1145 = vld [vmem:[#allocation2 + $0x8] sm:$0xfc]
    %v1146 = vld [vmem:[#allocation2 + $0x10] sm:$0x3]
    %v1147 = vld [vmem:[#allocation2 + $0x18] sm:$0x3]
    %v1148 = vpack.c.bf16 %v1146, %v1144
    %v1149 = vpack.c.bf16 %v1147, %v1145
    %v1150 = vld [vmem:[#allocation9] sm:$0xff]
    %v1151 = vld [vmem:[#allocation9 + $0x8] sm:$0xff]
    %v1152 = vld [vmem:[#allocation9 + $0x10] sm:$0xff]
    %v1153 = vld [vmem:[#allocation9 + $0x18] sm:$0xff]
    %v1154 = vld [vmem:[#allocation9 + $0x20] sm:$0xff]
    %v1155 = vld [vmem:[#allocation9 + $0x28] sm:$0xff]
    %v1156 = vld [vmem:[#allocation9 + $0x30] sm:$0xff]
    %v1157 = vld [vmem:[#allocation9 + $0x38] sm:$0xff]
    %v1158 = vld [vmem:[#allocation9 + $0x40] sm:$0xff]
    %v1159 = vld [vmem:[#allocation9 + $0x48] sm:$0xff]
    %v1160 = vld [vmem:[#allocation9 + $0x50] sm:$0xff]
    %v1161 = vld [vmem:[#allocation9 + $0x58] sm:$0xff]
    %v1162 = vld [vmem:[#allocation9 + $0x60] sm:$0xff]
    %v1163 = vld [vmem:[#allocation9 + $0x68] sm:$0xff]
    %v1164 = vld [vmem:[#allocation9 + $0x70] sm:$0xff]
    %v1165 = vld [vmem:[#allocation9 + $0x78] sm:$0xff]
    %v1166 = vld [vmem:[#allocation9 + $0x80] sm:$0xff]
    %v1167 = vld [vmem:[#allocation9 + $0x88] sm:$0xff]
    %v1168 = vld [vmem:[#allocation9 + $0x90] sm:$0xff]
    %v1169 = vld [vmem:[#allocation9 + $0x98] sm:$0xff]
    %v1170 = vld [vmem:[#allocation9 + $0xa0] sm:$0xff]
    %v1171 = vld [vmem:[#allocation9 + $0xa8] sm:$0xff]
    %v1172 = vld [vmem:[#allocation9 + $0xb0] sm:$0xff]
    %v1173 = vld [vmem:[#allocation9 + $0xb8] sm:$0xff]
    %v1174 = vld [vmem:[#allocation9 + $0xc0] sm:$0xff]
    %v1175 = vld [vmem:[#allocation9 + $0xc8] sm:$0xff]
    %v1176 = vld [vmem:[#allocation9 + $0xd0] sm:$0xff]
    %v1177 = vld [vmem:[#allocation9 + $0xd8] sm:$0xff]
    %v1178 = vld [vmem:[#allocation9 + $0xe0] sm:$0xff]
    %v1179 = vld [vmem:[#allocation9 + $0xe8] sm:$0xff]
    %v1180 = vld [vmem:[#allocation9 + $0xf0] sm:$0xff]
    %v1181 = vld [vmem:[#allocation9 + $0xf8] sm:$0xff]
    %v1182 = vld [vmem:[#allocation9 + $0x100] sm:$0xff]
    %v1183 = vld [vmem:[#allocation9 + $0x108] sm:$0xff]
    %v1184 = vld [vmem:[#allocation9 + $0x110] sm:$0xff]
    %v1185 = vld [vmem:[#allocation9 + $0x118] sm:$0xff]
    %v1186 = vld [vmem:[#allocation9 + $0x120] sm:$0xff]
    %v1187 = vld [vmem:[#allocation9 + $0x128] sm:$0xff]
    %v1188 = vld [vmem:[#allocation9 + $0x130] sm:$0xff]
    %v1189 = vld [vmem:[#allocation9 + $0x138] sm:$0xff]
    %v1190 = vld [vmem:[#allocation9 + $0x140] sm:$0xff]
    %v1191 = vld [vmem:[#allocation9 + $0x148] sm:$0xff]
    %v1192 = vld [vmem:[#allocation9 + $0x150] sm:$0xff]
    %v1193 = vld [vmem:[#allocation9 + $0x158] sm:$0xff]
    %v1194 = vld [vmem:[#allocation9 + $0x160] sm:$0xff]
    %v1195 = vld [vmem:[#allocation9 + $0x168] sm:$0xff]
    %v1196 = vld [vmem:[#allocation9 + $0x170] sm:$0xff]
    %v1197 = vld [vmem:[#allocation9 + $0x178] sm:$0xff]
    %v1198 = vld [vmem:[#allocation9 + $0x180] sm:$0xff]
    %v1199 = vld [vmem:[#allocation9 + $0x188] sm:$0xff]
    %v1200 = vld [vmem:[#allocation9 + $0x190] sm:$0xff]
    %v1201 = vld [vmem:[#allocation9 + $0x198] sm:$0xff]
    %v1202 = vld [vmem:[#allocation9 + $0x1a0] sm:$0xff]
    %v1203 = vld [vmem:[#allocation9 + $0x1a8] sm:$0xff]
    %v1204 = vld [vmem:[#allocation9 + $0x1b0] sm:$0xff]
    %v1205 = vld [vmem:[#allocation9 + $0x1b8] sm:$0xff]
    %v1206 = vld [vmem:[#allocation9 + $0x1c0] sm:$0xff]
    %v1207 = vld [vmem:[#allocation9 + $0x1c8] sm:$0xff]
    %v1208 = vld [vmem:[#allocation9 + $0x1d0] sm:$0xff]
    %v1209 = vld [vmem:[#allocation9 + $0x1d8] sm:$0xff]
    %v1210 = vld [vmem:[#allocation9 + $0x1e0] sm:$0xff]
    %v1211 = vld [vmem:[#allocation9 + $0x1e8] sm:$0xff]
    %v1212 = vld [vmem:[#allocation9 + $0x1f0] sm:$0xff]
    %v1213 = vld [vmem:[#allocation9 + $0x1f8] sm:$0xff]
    %v1214 = vld [vmem:[%s6] sm:$0xff]
    %v1215 = vld [vmem:[%s6 + $0x8] sm:$0xff]
    %v1216 = vld [vmem:[%s6 + $0x10] sm:$0xff]
    %v1217 = vld [vmem:[%s6 + $0x18] sm:$0xff]
    %v1218 = vld [vmem:[%s6 + $0x20] sm:$0xff]
    %v1219 = vld [vmem:[%s6 + $0x28] sm:$0xff]
    %v1220 = vld [vmem:[%s6 + $0x30] sm:$0xff]
    %v1221 = vld [vmem:[%s6 + $0x38] sm:$0xff]
    %v1222 = vld [vmem:[%s6 + $0x40] sm:$0xff]
    %v1223 = vld [vmem:[%s6 + $0x48] sm:$0xff]
    %v1224 = vld [vmem:[%s6 + $0x50] sm:$0xff]
    %v1225 = vld [vmem:[%s6 + $0x58] sm:$0xff]
    %v1226 = vld [vmem:[%s6 + $0x60] sm:$0xff]
    %v1227 = vld [vmem:[%s6 + $0x68] sm:$0xff]
    %v1228 = vld [vmem:[%s6 + $0x70] sm:$0xff]
    %v1229 = vld [vmem:[%s6 + $0x78] sm:$0xff]
    %v1230 = vld [vmem:[%s6 + $0x80] sm:$0xff]
    %v1231 = vld [vmem:[%s6 + $0x88] sm:$0xff]
    %v1232 = vld [vmem:[%s6 + $0x90] sm:$0xff]
    %v1233 = vld [vmem:[%s6 + $0x98] sm:$0xff]
    %v1234 = vld [vmem:[%s6 + $0xa0] sm:$0xff]
    %v1235 = vld [vmem:[%s6 + $0xa8] sm:$0xff]
    %v1236 = vld [vmem:[%s6 + $0xb0] sm:$0xff]
    %v1237 = vld [vmem:[%s6 + $0xb8] sm:$0xff]
    %v1238 = vld [vmem:[%s6 + $0xc0] sm:$0xff]
    %v1239 = vld [vmem:[%s6 + $0xc8] sm:$0xff]
    %v1240 = vld [vmem:[%s6 + $0xd0] sm:$0xff]
    %v1241 = vld [vmem:[%s6 + $0xd8] sm:$0xff]
    %v1242 = vld [vmem:[%s6 + $0xe0] sm:$0xff]
    %v1243 = vld [vmem:[%s6 + $0xe8] sm:$0xff]
    %v1244 = vld [vmem:[%s6 + $0xf0] sm:$0xff]
    %v1245 = vld [vmem:[%s6 + $0xf8] sm:$0xff]
    %v1246 = vld [vmem:[%s6 + $0x100] sm:$0xff]
    %v1247 = vld [vmem:[%s6 + $0x108] sm:$0xff]
    %v1248 = vld [vmem:[%s6 + $0x110] sm:$0xff]
    %v1249 = vld [vmem:[%s6 + $0x118] sm:$0xff]
    %v1250 = vld [vmem:[%s6 + $0x120] sm:$0xff]
    %v1251 = vld [vmem:[%s6 + $0x128] sm:$0xff]
    %v1252 = vld [vmem:[%s6 + $0x130] sm:$0xff]
    %v1253 = vld [vmem:[%s6 + $0x138] sm:$0xff]
    %v1254 = vld [vmem:[%s6 + $0x140] sm:$0xff]
    %v1255 = vld [vmem:[%s6 + $0x148] sm:$0xff]
    %v1256 = vld [vmem:[%s6 + $0x150] sm:$0xff]
    %v1257 = vld [vmem:[%s6 + $0x158] sm:$0xff]
    %v1258 = vld [vmem:[%s6 + $0x160] sm:$0xff]
    %v1259 = vld [vmem:[%s6 + $0x168] sm:$0xff]
    %v1260 = vld [vmem:[%s6 + $0x170] sm:$0xff]
    %v1261 = vld [vmem:[%s6 + $0x178] sm:$0xff]
    %v1262 = vld [vmem:[%s6 + $0x180] sm:$0xff]
    %v1263 = vld [vmem:[%s6 + $0x188] sm:$0xff]
    %v1264 = vld [vmem:[%s6 + $0x190] sm:$0xff]
    %v1265 = vld [vmem:[%s6 + $0x198] sm:$0xff]
    %v1266 = vld [vmem:[%s6 + $0x1a0] sm:$0xff]
    %v1267 = vld [vmem:[%s6 + $0x1a8] sm:$0xff]
    %v1268 = vld [vmem:[%s6 + $0x1b0] sm:$0xff]
    %v1269 = vld [vmem:[%s6 + $0x1b8] sm:$0xff]
    %v1270 = vld [vmem:[%s6 + $0x1c0] sm:$0xff]
    %v1271 = vld [vmem:[%s6 + $0x1c8] sm:$0xff]
    %v1272 = vld [vmem:[%s6 + $0x1d0] sm:$0xff]
    %v1273 = vld [vmem:[%s6 + $0x1d8] sm:$0xff]
    %v1274 = vld [vmem:[%s6 + $0x1e0] sm:$0xff]
    %v1275 = vld [vmem:[%s6 + $0x1e8] sm:$0xff]
    %v1276 = vld [vmem:[%s6 + $0x1f0] sm:$0xff]
    %v1277 = vld [vmem:[%s6 + $0x1f8] sm:$0xff]
    %v1280 = vrot.slane %v1148, 1
    %v1281 = vrot.slane %v1149, 1
    %v1348 = vunpack.c.l.b16 %v1214
    %v1349 = vunpack.c.h.b16 %v1214
    %v1350 = vunpack.c.l.b16 %v1215
    %v1351 = vunpack.c.h.b16 %v1215
    %v1352 = vunpack.c.l.b16 %v1216
    %v1353 = vunpack.c.h.b16 %v1216
    %v1354 = vunpack.c.l.b16 %v1217
    %v1355 = vunpack.c.h.b16 %v1217
    %v1356 = vunpack.c.l.b16 %v1218
    %v1357 = vunpack.c.h.b16 %v1218
    %v1358 = vunpack.c.l.b16 %v1219
    %v1359 = vunpack.c.h.b16 %v1219
    %v1360 = vunpack.c.l.b16 %v1220
    %v1361 = vunpack.c.h.b16 %v1220
    %v1362 = vunpack.c.l.b16 %v1221
    %v1363 = vunpack.c.h.b16 %v1221
    %v1364 = vunpack.c.l.b16 %v1222
    %v1365 = vunpack.c.h.b16 %v1222
    %v1366 = vunpack.c.l.b16 %v1223
    %v1367 = vunpack.c.h.b16 %v1223
    %v1368 = vunpack.c.l.b16 %v1224
    %v1369 = vunpack.c.h.b16 %v1224
    %v1370 = vunpack.c.l.b16 %v1225
    %v1371 = vunpack.c.h.b16 %v1225
    %v1372 = vunpack.c.l.b16 %v1226
    %v1373 = vunpack.c.h.b16 %v1226
    %v1374 = vunpack.c.l.b16 %v1227
    %v1375 = vunpack.c.h.b16 %v1227
    %v1376 = vunpack.c.l.b16 %v1228
    %v1377 = vunpack.c.h.b16 %v1228
    %v1378 = vunpack.c.l.b16 %v1229
    %v1379 = vunpack.c.h.b16 %v1229
    %v1380 = vunpack.c.l.b16 %v1230
    %v1381 = vunpack.c.h.b16 %v1230
    %v1382 = vunpack.c.l.b16 %v1231
    %v1383 = vunpack.c.h.b16 %v1231
    %v1384 = vunpack.c.l.b16 %v1232
    %v1385 = vunpack.c.h.b16 %v1232
    %v1386 = vunpack.c.l.b16 %v1233
    %v1387 = vunpack.c.h.b16 %v1233
    %v1388 = vunpack.c.l.b16 %v1234
    %v1389 = vunpack.c.h.b16 %v1234
    %v1390 = vunpack.c.l.b16 %v1235
    %v1391 = vunpack.c.h.b16 %v1235
    %v1392 = vunpack.c.l.b16 %v1236
    %v1393 = vunpack.c.h.b16 %v1236
    %v1394 = vunpack.c.l.b16 %v1237
    %v1395 = vunpack.c.h.b16 %v1237
    %v1396 = vunpack.c.l.b16 %v1238
    %v1397 = vunpack.c.h.b16 %v1238
    %v1398 = vunpack.c.l.b16 %v1239
    %v1399 = vunpack.c.h.b16 %v1239
    %v1400 = vunpack.c.l.b16 %v1240
    %v1401 = vunpack.c.h.b16 %v1240
    %v1402 = vunpack.c.l.b16 %v1241
    %v1403 = vunpack.c.h.b16 %v1241
    %v1404 = vunpack.c.l.b16 %v1242
    %v1405 = vunpack.c.h.b16 %v1242
    %v1406 = vunpack.c.l.b16 %v1243
    %v1407 = vunpack.c.h.b16 %v1243
    %v1408 = vunpack.c.l.b16 %v1244
    %v1409 = vunpack.c.h.b16 %v1244
    %v1410 = vunpack.c.l.b16 %v1245
    %v1411 = vunpack.c.h.b16 %v1245
    %v1412 = vunpack.c.l.b16 %v1246
    %v1413 = vunpack.c.h.b16 %v1246
    %v1414 = vunpack.c.l.b16 %v1247
    %v1415 = vunpack.c.h.b16 %v1247
    %v1416 = vunpack.c.l.b16 %v1248
    %v1417 = vunpack.c.h.b16 %v1248
    %v1418 = vunpack.c.l.b16 %v1249
    %v1419 = vunpack.c.h.b16 %v1249
    %v1420 = vunpack.c.l.b16 %v1250
    %v1421 = vunpack.c.h.b16 %v1250
    %v1422 = vunpack.c.l.b16 %v1251
    %v1423 = vunpack.c.h.b16 %v1251
    %v1424 = vunpack.c.l.b16 %v1252
    %v1425 = vunpack.c.h.b16 %v1252
    %v1426 = vunpack.c.l.b16 %v1253
    %v1427 = vunpack.c.h.b16 %v1253
    %v1428 = vunpack.c.l.b16 %v1254
    %v1429 = vunpack.c.h.b16 %v1254
    %v1430 = vunpack.c.l.b16 %v1255
    %v1431 = vunpack.c.h.b16 %v1255
    %v1432 = vunpack.c.l.b16 %v1256
    %v1433 = vunpack.c.h.b16 %v1256
    %v1434 = vunpack.c.l.b16 %v1257
    %v1435 = vunpack.c.h.b16 %v1257
    %v1436 = vunpack.c.l.b16 %v1258
    %v1437 = vunpack.c.h.b16 %v1258
    %v1438 = vunpack.c.l.b16 %v1259
    %v1439 = vunpack.c.h.b16 %v1259
    %v1440 = vunpack.c.l.b16 %v1260
    %v1441 = vunpack.c.h.b16 %v1260
    %v1442 = vunpack.c.l.b16 %v1261
    %v1443 = vunpack.c.h.b16 %v1261
    %v1444 = vunpack.c.l.b16 %v1262
    %v1445 = vunpack.c.h.b16 %v1262
    %v1446 = vunpack.c.l.b16 %v1263
    %v1447 = vunpack.c.h.b16 %v1263
    %v1448 = vunpack.c.l.b16 %v1264
    %v1449 = vunpack.c.h.b16 %v1264
    %v1450 = vunpack.c.l.b16 %v1265
    %v1451 = vunpack.c.h.b16 %v1265
    %v1452 = vunpack.c.l.b16 %v1266
    %v1453 = vunpack.c.h.b16 %v1266
    %v1454 = vunpack.c.l.b16 %v1267
    %v1455 = vunpack.c.h.b16 %v1267
    %v1456 = vunpack.c.l.b16 %v1268
    %v1457 = vunpack.c.h.b16 %v1268
    %v1458 = vunpack.c.l.b16 %v1269
    %v1459 = vunpack.c.h.b16 %v1269
    %v1460 = vunpack.c.l.b16 %v1270
    %v1461 = vunpack.c.h.b16 %v1270
    %v1462 = vunpack.c.l.b16 %v1271
    %v1463 = vunpack.c.h.b16 %v1271
    %v1464 = vunpack.c.l.b16 %v1272
    %v1465 = vunpack.c.h.b16 %v1272
    %v1466 = vunpack.c.l.b16 %v1273
    %v1467 = vunpack.c.h.b16 %v1273
    %v1468 = vunpack.c.l.b16 %v1274
    %v1469 = vunpack.c.h.b16 %v1274
    %v1470 = vunpack.c.l.b16 %v1275
    %v1471 = vunpack.c.h.b16 %v1275
    %v1472 = vunpack.c.l.b16 %v1276
    %v1473 = vunpack.c.h.b16 %v1276
    %v1474 = vunpack.c.l.b16 %v1277
    %v1475 = vunpack.c.h.b16 %v1277
    %v1476 = vpack.c.b16 %v1352, %v1348
    %v1477 = vpack.c.b16 %v1353, %v1349
    %v1478 = vpack.c.b16 %v1354, %v1350
    %v1479 = vpack.c.b16 %v1355, %v1351
    %v1480 = vpack.c.b16 %v1360, %v1356
    %v1481 = vpack.c.b16 %v1361, %v1357
    %v1482 = vpack.c.b16 %v1362, %v1358
    %v1483 = vpack.c.b16 %v1363, %v1359
    %v1484 = vpack.c.b16 %v1368, %v1364
    %v1485 = vpack.c.b16 %v1369, %v1365
    %v1486 = vpack.c.b16 %v1370, %v1366
    %v1487 = vpack.c.b16 %v1371, %v1367
    %v1488 = vpack.c.b16 %v1376, %v1372
    %v1489 = vpack.c.b16 %v1377, %v1373
    %v1490 = vpack.c.b16 %v1378, %v1374
    %v1491 = vpack.c.b16 %v1379, %v1375
    %v1492 = vpack.c.b16 %v1384, %v1380
    %v1493 = vpack.c.b16 %v1385, %v1381
    %v1494 = vpack.c.b16 %v1386, %v1382
    %v1495 = vpack.c.b16 %v1387, %v1383
    %v1496 = vpack.c.b16 %v1392, %v1388
    %v1497 = vpack.c.b16 %v1393, %v1389
    %v1498 = vpack.c.b16 %v1394, %v1390
    %v1499 = vpack.c.b16 %v1395, %v1391
    %v1500 = vpack.c.b16 %v1400, %v1396
    %v1501 = vpack.c.b16 %v1401, %v1397
    %v1502 = vpack.c.b16 %v1402, %v1398
    %v1503 = vpack.c.b16 %v1403, %v1399
    %v1504 = vpack.c.b16 %v1408, %v1404
    %v1505 = vpack.c.b16 %v1409, %v1405
    %v1506 = vpack.c.b16 %v1410, %v1406
    %v1507 = vpack.c.b16 %v1411, %v1407
    %v1508 = vpack.c.b16 %v1416, %v1412
    %v1509 = vpack.c.b16 %v1417, %v1413
    %v1510 = vpack.c.b16 %v1418, %v1414
    %v1511 = vpack.c.b16 %v1419, %v1415
    %v1512 = vpack.c.b16 %v1424, %v1420
    %v1513 = vpack.c.b16 %v1425, %v1421
    %v1514 = vpack.c.b16 %v1426, %v1422
    %v1515 = vpack.c.b16 %v1427, %v1423
    %v1516 = vpack.c.b16 %v1432, %v1428
    %v1517 = vpack.c.b16 %v1433, %v1429
    %v1518 = vpack.c.b16 %v1434, %v1430
    %v1519 = vpack.c.b16 %v1435, %v1431
    %v1520 = vpack.c.b16 %v1440, %v1436
    %v1521 = vpack.c.b16 %v1441, %v1437
    %v1522 = vpack.c.b16 %v1442, %v1438
    %v1523 = vpack.c.b16 %v1443, %v1439
    %v1524 = vpack.c.b16 %v1448, %v1444
    %v1525 = vpack.c.b16 %v1449, %v1445
    %v1526 = vpack.c.b16 %v1450, %v1446
    %v1527 = vpack.c.b16 %v1451, %v1447
    %v1528 = vpack.c.b16 %v1456, %v1452
    %v1529 = vpack.c.b16 %v1457, %v1453
    %v1530 = vpack.c.b16 %v1458, %v1454
    %v1531 = vpack.c.b16 %v1459, %v1455
    %v1532 = vpack.c.b16 %v1464, %v1460
    %v1533 = vpack.c.b16 %v1465, %v1461
    %v1534 = vpack.c.b16 %v1466, %v1462
    %v1535 = vpack.c.b16 %v1467, %v1463
    %v1536 = vpack.c.b16 %v1472, %v1468
    %v1537 = vpack.c.b16 %v1473, %v1469
    %v1538 = vpack.c.b16 %v1474, %v1470
    %v1539 = vpack.c.b16 %v1475, %v1471
    %1604 = vmatprep.subr.bf16.mxu0 %v1505
    %1605 = vmatpush1.bf16.msra.mxu0 %v1504
    %1606 = vmatprep.subr.bf16.mxu0 %v1501
    %1607 = vmatpush1.bf16.msra.mxu0 %v1500
    %1608 = vmatprep.subr.bf16.mxu0 %v1497
    %1609 = vmatpush1.bf16.msra.mxu0 %v1496
    %1610 = vmatprep.subr.bf16.mxu0 %v1493
    %1611 = vmatpush1.bf16.msra.mxu0 %v1492
    %1612 = vmatprep.subr.bf16.mxu0 %v1489
    %1613 = vmatpush1.bf16.msra.mxu0 %v1488
    %1614 = vmatprep.subr.bf16.mxu0 %v1485
    %1615 = vmatpush1.bf16.msra.mxu0 %v1484
    %1616 = vmatprep.subr.bf16.mxu0 %v1481
    %1617 = vmatpush1.bf16.msra.mxu0 %v1480
    %1618 = vmatprep.subr.bf16.mxu0 %v1477
    %1619 = vmatpush1.bf16.msra.mxu0 %v1476
    %1620 = vmatprep.subr.bf16.mxu0 %v1537
    %1621 = vmatpush2.bf16.msra.mxu0 %v1536
    %1622 = vmatprep.subr.bf16.mxu0 %v1533
    %1623 = vmatpush2.bf16.msra.mxu0 %v1532
    %1624 = vmatprep.subr.bf16.mxu0 %v1529
    %1625 = vmatpush2.bf16.msra.mxu0 %v1528
    %1626 = vmatprep.subr.bf16.mxu0 %v1525
    %1627 = vmatpush2.bf16.msra.mxu0 %v1524
    %1628 = vmatprep.subr.bf16.mxu0 %v1521
    %1629 = vmatpush2.bf16.msra.mxu0 %v1520
    %1630 = vmatprep.subr.bf16.mxu0 %v1517
    %1631 = vmatpush2.bf16.msra.mxu0 %v1516
    %1632 = vmatprep.subr.bf16.mxu0 %v1513
    %1633 = vmatpush2.bf16.msra.mxu0 %v1512
    %1634 = vmatprep.subr.bf16.mxu0 %v1509
    %1635 = vmatpush2.bf16.msra.mxu0 %v1508
    %1636 = vmatprep.mubr.bf16.mxu0 %v1281
    %1637 = vmatmul.mubr.bf16.gmra.mxu0 %v1280
    %v1638 = vpop.f32.mrf.mxu0
    %v1639 = vadd.f32 0.0, %v1638
    %v1640 = vpop.f32.mrf.mxu0
    %v1641 = vadd.f32 0.0, %v1640
    %v1642 = vpop.f32.mrf.mxu0
    %v1643 = vpop.f32.mrf.mxu0
    %1644 = vdwg.mxu0
    %1645 = vmatprep.subr.bf16.mxu0 %v1507
    %1646 = vmatpush1.bf16.msra.mxu0 %v1506
    %1647 = vmatprep.subr.bf16.mxu0 %v1503
    %1648 = vmatpush1.bf16.msra.mxu0 %v1502
    %1649 = vmatprep.subr.bf16.mxu0 %v1499
    %1650 = vmatpush1.bf16.msra.mxu0 %v1498
    %1651 = vmatprep.subr.bf16.mxu0 %v1495
    %1652 = vmatpush1.bf16.msra.mxu0 %v1494
    %1653 = vmatprep.subr.bf16.mxu0 %v1491
    %1654 = vmatpush1.bf16.msra.mxu0 %v1490
    %1655 = vmatprep.subr.bf16.mxu0 %v1487
    %1656 = vmatpush1.bf16.msra.mxu0 %v1486
    %1657 = vmatprep.subr.bf16.mxu0 %v1483
    %1658 = vmatpush1.bf16.msra.mxu0 %v1482
    %1659 = vmatprep.subr.bf16.mxu0 %v1479
    %1660 = vmatpush1.bf16.msra.mxu0 %v1478
    %1661 = vmatprep.subr.bf16.mxu0 %v1539
    %1662 = vmatpush2.bf16.msra.mxu0 %v1538
    %1663 = vmatprep.subr.bf16.mxu0 %v1535
    %1664 = vmatpush2.bf16.msra.mxu0 %v1534
    %1665 = vmatprep.subr.bf16.mxu0 %v1531
    %1666 = vmatpush2.bf16.msra.mxu0 %v1530
    %1667 = vmatprep.subr.bf16.mxu0 %v1527
    %1668 = vmatpush2.bf16.msra.mxu0 %v1526
    %1669 = vmatprep.subr.bf16.mxu0 %v1523
    %1670 = vmatpush2.bf16.msra.mxu0 %v1522
    %1671 = vmatprep.subr.bf16.mxu0 %v1519
    %1672 = vmatpush2.bf16.msra.mxu0 %v1518
    %1673 = vmatprep.subr.bf16.mxu0 %v1515
    %1674 = vmatpush2.bf16.msra.mxu0 %v1514
    %1675 = vmatprep.subr.bf16.mxu0 %v1511
    %1676 = vmatpush2.bf16.msra.mxu0 %v1510
    %1677 = vmatprep.mubr.bf16.mxu0 %v1281
    %1678 = vmatmul.mubr.bf16.gmra.mxu0 %v1280
    %v1679 = vpop.f32.mrf.mxu0
    %v1680 = vadd.f32 0.0, %v1679
    %v1681 = vpop.f32.mrf.mxu0
    %v1682 = vadd.f32 0.0, %v1681
    %v1683 = vpop.f32.mrf.mxu0
    %v1684 = vpop.f32.mrf.mxu0
    %1685 = vdwg.mxu0
    %v1750 = vunpack.c.l.b16 %v1150
    %v1751 = vunpack.c.h.b16 %v1150
    %v1752 = vunpack.c.l.b16 %v1151
    %v1753 = vunpack.c.h.b16 %v1151
    %v1754 = vunpack.c.l.b16 %v1152
    %v1755 = vunpack.c.h.b16 %v1152
    %v1756 = vunpack.c.l.b16 %v1153
    %v1757 = vunpack.c.h.b16 %v1153
    %v1758 = vunpack.c.l.b16 %v1154
    %v1759 = vunpack.c.h.b16 %v1154
    %v1760 = vunpack.c.l.b16 %v1155
    %v1761 = vunpack.c.h.b16 %v1155
    %v1762 = vunpack.c.l.b16 %v1156
    %v1763 = vunpack.c.h.b16 %v1156
    %v1764 = vunpack.c.l.b16 %v1157
    %v1765 = vunpack.c.h.b16 %v1157
    %v1766 = vunpack.c.l.b16 %v1158
    %v1767 = vunpack.c.h.b16 %v1158
    %v1768 = vunpack.c.l.b16 %v1159
    %v1769 = vunpack.c.h.b16 %v1159
    %v1770 = vunpack.c.l.b16 %v1160
    %v1771 = vunpack.c.h.b16 %v1160
    %v1772 = vunpack.c.l.b16 %v1161
    %v1773 = vunpack.c.h.b16 %v1161
    %v1774 = vunpack.c.l.b16 %v1162
    %v1775 = vunpack.c.h.b16 %v1162
    %v1776 = vunpack.c.l.b16 %v1163
    %v1777 = vunpack.c.h.b16 %v1163
    %v1778 = vunpack.c.l.b16 %v1164
    %v1779 = vunpack.c.h.b16 %v1164
    %v1780 = vunpack.c.l.b16 %v1165
    %v1781 = vunpack.c.h.b16 %v1165
    %v1782 = vunpack.c.l.b16 %v1166
    %v1783 = vunpack.c.h.b16 %v1166
    %v1784 = vunpack.c.l.b16 %v1167
    %v1785 = vunpack.c.h.b16 %v1167
    %v1786 = vunpack.c.l.b16 %v1168
    %v1787 = vunpack.c.h.b16 %v1168
    %v1788 = vunpack.c.l.b16 %v1169
    %v1789 = vunpack.c.h.b16 %v1169
    %v1790 = vunpack.c.l.b16 %v1170
    %v1791 = vunpack.c.h.b16 %v1170
    %v1792 = vunpack.c.l.b16 %v1171
    %v1793 = vunpack.c.h.b16 %v1171
    %v1794 = vunpack.c.l.b16 %v1172
    %v1795 = vunpack.c.h.b16 %v1172
    %v1796 = vunpack.c.l.b16 %v1173
    %v1797 = vunpack.c.h.b16 %v1173
    %v1798 = vunpack.c.l.b16 %v1174
    %v1799 = vunpack.c.h.b16 %v1174
    %v1800 = vunpack.c.l.b16 %v1175
    %v1801 = vunpack.c.h.b16 %v1175
    %v1802 = vunpack.c.l.b16 %v1176
    %v1803 = vunpack.c.h.b16 %v1176
    %v1804 = vunpack.c.l.b16 %v1177
    %v1805 = vunpack.c.h.b16 %v1177
    %v1806 = vunpack.c.l.b16 %v1178
    %v1807 = vunpack.c.h.b16 %v1178
    %v1808 = vunpack.c.l.b16 %v1179
    %v1809 = vunpack.c.h.b16 %v1179
    %v1810 = vunpack.c.l.b16 %v1180
    %v1811 = vunpack.c.h.b16 %v1180
    %v1812 = vunpack.c.l.b16 %v1181
    %v1813 = vunpack.c.h.b16 %v1181
    %v1814 = vunpack.c.l.b16 %v1182
    %v1815 = vunpack.c.h.b16 %v1182
    %v1816 = vunpack.c.l.b16 %v1183
    %v1817 = vunpack.c.h.b16 %v1183
    %v1818 = vunpack.c.l.b16 %v1184
    %v1819 = vunpack.c.h.b16 %v1184
    %v1820 = vunpack.c.l.b16 %v1185
    %v1821 = vunpack.c.h.b16 %v1185
    %v1822 = vunpack.c.l.b16 %v1186
    %v1823 = vunpack.c.h.b16 %v1186
    %v1824 = vunpack.c.l.b16 %v1187
    %v1825 = vunpack.c.h.b16 %v1187
    %v1826 = vunpack.c.l.b16 %v1188
    %v1827 = vunpack.c.h.b16 %v1188
    %v1828 = vunpack.c.l.b16 %v1189
    %v1829 = vunpack.c.h.b16 %v1189
    %v1830 = vunpack.c.l.b16 %v1190
    %v1831 = vunpack.c.h.b16 %v1190
    %v1832 = vunpack.c.l.b16 %v1191
    %v1833 = vunpack.c.h.b16 %v1191
    %v1834 = vunpack.c.l.b16 %v1192
    %v1835 = vunpack.c.h.b16 %v1192
    %v1836 = vunpack.c.l.b16 %v1193
    %v1837 = vunpack.c.h.b16 %v1193
    %v1838 = vunpack.c.l.b16 %v1194
    %v1839 = vunpack.c.h.b16 %v1194
    %v1840 = vunpack.c.l.b16 %v1195
    %v1841 = vunpack.c.h.b16 %v1195
    %v1842 = vunpack.c.l.b16 %v1196
    %v1843 = vunpack.c.h.b16 %v1196
    %v1844 = vunpack.c.l.b16 %v1197
    %v1845 = vunpack.c.h.b16 %v1197
    %v1846 = vunpack.c.l.b16 %v1198
    %v1847 = vunpack.c.h.b16 %v1198
    %v1848 = vunpack.c.l.b16 %v1199
    %v1849 = vunpack.c.h.b16 %v1199
    %v1850 = vunpack.c.l.b16 %v1200
    %v1851 = vunpack.c.h.b16 %v1200
    %v1852 = vunpack.c.l.b16 %v1201
    %v1853 = vunpack.c.h.b16 %v1201
    %v1854 = vunpack.c.l.b16 %v1202
    %v1855 = vunpack.c.h.b16 %v1202
    %v1856 = vunpack.c.l.b16 %v1203
    %v1857 = vunpack.c.h.b16 %v1203
    %v1858 = vunpack.c.l.b16 %v1204
    %v1859 = vunpack.c.h.b16 %v1204
    %v1860 = vunpack.c.l.b16 %v1205
    %v1861 = vunpack.c.h.b16 %v1205
    %v1862 = vunpack.c.l.b16 %v1206
    %v1863 = vunpack.c.h.b16 %v1206
    %v1864 = vunpack.c.l.b16 %v1207
    %v1865 = vunpack.c.h.b16 %v1207
    %v1866 = vunpack.c.l.b16 %v1208
    %v1867 = vunpack.c.h.b16 %v1208
    %v1868 = vunpack.c.l.b16 %v1209
    %v1869 = vunpack.c.h.b16 %v1209
    %v1870 = vunpack.c.l.b16 %v1210
    %v1871 = vunpack.c.h.b16 %v1210
    %v1872 = vunpack.c.l.b16 %v1211
    %v1873 = vunpack.c.h.b16 %v1211
    %v1874 = vunpack.c.l.b16 %v1212
    %v1875 = vunpack.c.h.b16 %v1212
    %v1876 = vunpack.c.l.b16 %v1213
    %v1877 = vunpack.c.h.b16 %v1213
    %v1878 = vpack.c.b16 %v1754, %v1750
    %v1879 = vpack.c.b16 %v1755, %v1751
    %v1880 = vpack.c.b16 %v1756, %v1752
    %v1881 = vpack.c.b16 %v1757, %v1753
    %v1882 = vpack.c.b16 %v1762, %v1758
    %v1883 = vpack.c.b16 %v1763, %v1759
    %v1884 = vpack.c.b16 %v1764, %v1760
    %v1885 = vpack.c.b16 %v1765, %v1761
    %v1886 = vpack.c.b16 %v1770, %v1766
    %v1887 = vpack.c.b16 %v1771, %v1767
    %v1888 = vpack.c.b16 %v1772, %v1768
    %v1889 = vpack.c.b16 %v1773, %v1769
    %v1890 = vpack.c.b16 %v1778, %v1774
    %v1891 = vpack.c.b16 %v1779, %v1775
    %v1892 = vpack.c.b16 %v1780, %v1776
    %v1893 = vpack.c.b16 %v1781, %v1777
    %v1894 = vpack.c.b16 %v1786, %v1782
    %v1895 = vpack.c.b16 %v1787, %v1783
    %v1896 = vpack.c.b16 %v1788, %v1784
    %v1897 = vpack.c.b16 %v1789, %v1785
    %v1898 = vpack.c.b16 %v1794, %v1790
    %v1899 = vpack.c.b16 %v1795, %v1791
    %v1900 = vpack.c.b16 %v1796, %v1792
    %v1901 = vpack.c.b16 %v1797, %v1793
    %v1902 = vpack.c.b16 %v1802, %v1798
    %v1903 = vpack.c.b16 %v1803, %v1799
    %v1904 = vpack.c.b16 %v1804, %v1800
    %v1905 = vpack.c.b16 %v1805, %v1801
    %v1906 = vpack.c.b16 %v1810, %v1806
    %v1907 = vpack.c.b16 %v1811, %v1807
    %v1908 = vpack.c.b16 %v1812, %v1808
    %v1909 = vpack.c.b16 %v1813, %v1809
    %v1910 = vpack.c.b16 %v1818, %v1814
    %v1911 = vpack.c.b16 %v1819, %v1815
    %v1912 = vpack.c.b16 %v1820, %v1816
    %v1913 = vpack.c.b16 %v1821, %v1817
    %v1914 = vpack.c.b16 %v1826, %v1822
    %v1915 = vpack.c.b16 %v1827, %v1823
    %v1916 = vpack.c.b16 %v1828, %v1824
    %v1917 = vpack.c.b16 %v1829, %v1825
    %v1918 = vpack.c.b16 %v1834, %v1830
    %v1919 = vpack.c.b16 %v1835, %v1831
    %v1920 = vpack.c.b16 %v1836, %v1832
    %v1921 = vpack.c.b16 %v1837, %v1833
    %v1922 = vpack.c.b16 %v1842, %v1838
    %v1923 = vpack.c.b16 %v1843, %v1839
    %v1924 = vpack.c.b16 %v1844, %v1840
    %v1925 = vpack.c.b16 %v1845, %v1841
    %v1926 = vpack.c.b16 %v1850, %v1846
    %v1927 = vpack.c.b16 %v1851, %v1847
    %v1928 = vpack.c.b16 %v1852, %v1848
    %v1929 = vpack.c.b16 %v1853, %v1849
    %v1930 = vpack.c.b16 %v1858, %v1854
    %v1931 = vpack.c.b16 %v1859, %v1855
    %v1932 = vpack.c.b16 %v1860, %v1856
    %v1933 = vpack.c.b16 %v1861, %v1857
    %v1934 = vpack.c.b16 %v1866, %v1862
    %v1935 = vpack.c.b16 %v1867, %v1863
    %v1936 = vpack.c.b16 %v1868, %v1864
    %v1937 = vpack.c.b16 %v1869, %v1865
    %v1938 = vpack.c.b16 %v1874, %v1870
    %v1939 = vpack.c.b16 %v1875, %v1871
    %v1940 = vpack.c.b16 %v1876, %v1872
    %v1941 = vpack.c.b16 %v1877, %v1873
    %2006 = vmatprep.subr.bf16.mxu0 %v1907
    %2007 = vmatpush1.bf16.msra.mxu0 %v1906
    %2008 = vmatprep.subr.bf16.mxu0 %v1903
    %2009 = vmatpush1.bf16.msra.mxu0 %v1902
    %2010 = vmatprep.subr.bf16.mxu0 %v1899
    %2011 = vmatpush1.bf16.msra.mxu0 %v1898
    %2012 = vmatprep.subr.bf16.mxu0 %v1895
    %2013 = vmatpush1.bf16.msra.mxu0 %v1894
    %2014 = vmatprep.subr.bf16.mxu0 %v1891
    %2015 = vmatpush1.bf16.msra.mxu0 %v1890
    %2016 = vmatprep.subr.bf16.mxu0 %v1887
    %2017 = vmatpush1.bf16.msra.mxu0 %v1886
    %2018 = vmatprep.subr.bf16.mxu0 %v1883
    %2019 = vmatpush1.bf16.msra.mxu0 %v1882
    %2020 = vmatprep.subr.bf16.mxu0 %v1879
    %2021 = vmatpush1.bf16.msra.mxu0 %v1878
    %2022 = vmatprep.subr.bf16.mxu0 %v1939
    %2023 = vmatpush2.bf16.msra.mxu0 %v1938
    %2024 = vmatprep.subr.bf16.mxu0 %v1935
    %2025 = vmatpush2.bf16.msra.mxu0 %v1934
    %2026 = vmatprep.subr.bf16.mxu0 %v1931
    %2027 = vmatpush2.bf16.msra.mxu0 %v1930
    %2028 = vmatprep.subr.bf16.mxu0 %v1927
    %2029 = vmatpush2.bf16.msra.mxu0 %v1926
    %2030 = vmatprep.subr.bf16.mxu0 %v1923
    %2031 = vmatpush2.bf16.msra.mxu0 %v1922
    %2032 = vmatprep.subr.bf16.mxu0 %v1919
    %2033 = vmatpush2.bf16.msra.mxu0 %v1918
    %2034 = vmatprep.subr.bf16.mxu0 %v1915
    %2035 = vmatpush2.bf16.msra.mxu0 %v1914
    %2036 = vmatprep.subr.bf16.mxu0 %v1911
    %2037 = vmatpush2.bf16.msra.mxu0 %v1910
    %2038 = vmatprep.mubr.bf16.mxu0 %v1143
    %2039 = vmatmul.mubr.bf16.gmra.mxu0 %v1142
    %v2040 = vpop.f32.mrf.mxu0
    %v2041 = vadd.f32 %v1639, %v2040
    %v2042 = vpop.f32.mrf.mxu0
    %v2043 = vadd.f32 %v1641, %v2042
    %v2044 = vpop.f32.mrf.mxu0
    %v2045 = vpop.f32.mrf.mxu0
    %2046 = vdwg.mxu0
    %2047 = vmatprep.subr.bf16.mxu0 %v1909
    %2048 = vmatpush1.bf16.msra.mxu0 %v1908
    %2049 = vmatprep.subr.bf16.mxu0 %v1905
    %2050 = vmatpush1.bf16.msra.mxu0 %v1904
    %2051 = vmatprep.subr.bf16.mxu0 %v1901
    %2052 = vmatpush1.bf16.msra.mxu0 %v1900
    %2053 = vmatprep.subr.bf16.mxu0 %v1897
    %2054 = vmatpush1.bf16.msra.mxu0 %v1896
    %2055 = vmatprep.subr.bf16.mxu0 %v1893
    %2056 = vmatpush1.bf16.msra.mxu0 %v1892
    %2057 = vmatprep.subr.bf16.mxu0 %v1889
    %2058 = vmatpush1.bf16.msra.mxu0 %v1888
    %2059 = vmatprep.subr.bf16.mxu0 %v1885
    %2060 = vmatpush1.bf16.msra.mxu0 %v1884
    %2061 = vmatprep.subr.bf16.mxu0 %v1881
    %2062 = vmatpush1.bf16.msra.mxu0 %v1880
    %2063 = vmatprep.subr.bf16.mxu0 %v1941
    %2064 = vmatpush2.bf16.msra.mxu0 %v1940
    %2065 = vmatprep.subr.bf16.mxu0 %v1937
    %2066 = vmatpush2.bf16.msra.mxu0 %v1936
    %2067 = vmatprep.subr.bf16.mxu0 %v1933
    %2068 = vmatpush2.bf16.msra.mxu0 %v1932
    %2069 = vmatprep.subr.bf16.mxu0 %v1929
    %2070 = vmatpush2.bf16.msra.mxu0 %v1928
    %2071 = vmatprep.subr.bf16.mxu0 %v1925
    %2072 = vmatpush2.bf16.msra.mxu0 %v1924
    %2073 = vmatprep.subr.bf16.mxu0 %v1921
    %2074 = vmatpush2.bf16.msra.mxu0 %v1920
    %2075 = vmatprep.subr.bf16.mxu0 %v1917
    %2076 = vmatpush2.bf16.msra.mxu0 %v1916
    %2077 = vmatprep.subr.bf16.mxu0 %v1913
    %2078 = vmatpush2.bf16.msra.mxu0 %v1912
    %2079 = vmatprep.mubr.bf16.mxu0 %v1143
    %2080 = vmatmul.mubr.bf16.gmra.mxu0 %v1142
    %v2081 = vpop.f32.mrf.mxu0
    %v2082 = vadd.f32 %v1680, %v2081
    %v2083 = vpop.f32.mrf.mxu0
    %v2084 = vadd.f32 %v1682, %v2083
    %v2085 = vpop.f32.mrf.mxu0
    %v2086 = vpop.f32.mrf.mxu0
    %2087 = vdwg.mxu0
    %v2088 = vld [vmem:[%s7] sm:$0xf]
    %v2090 = vlaneseq
    %v2091 = vshrl.u32 %v2090, 7
    %v2092 = vsub.s32 0, %v2091
    %v2093 = vrot.slane %v2088, %v2092
    %v2094 = vlaneseq
    %v2095 = vshrl.u32 %v2094, 7
    %v2096 = vsub.s32 1, %v2095
    %v2097 = vrot.slane %v2088, %v2096
    %v2098 = vlaneseq
    %v2099 = vshrl.u32 %v2098, 7
    %v2100 = vsub.s32 2, %v2099
    %v2101 = vrot.slane %v2088, %v2100
    %v2102 = vlaneseq
    %v2103 = vshrl.u32 %v2102, 7
    %v2104 = vsub.s32 3, %v2103
    %v2105 = vrot.slane %v2088, %v2104
    %v2110 = vadd.f32 %v2041, %v2093
    %v2111 = vadd.f32 %v2043, %v2097
    %v2112 = vadd.f32 %v2082, %v2101
    %v2113 = vadd.f32 %v2084, %v2105
    %v2114 = vmax.f32 %v2110, %v2111
    %v2115 = vmax.f32 %v2112, %v2113
    %v2116 = vmax.f32 %v2114, %v2115
    %v2117 = vmin.f32 %v2116, 0.0
    %v2118 = vmax.f32 %v2117, -60.0
    %v2119 = vmul.f32 %v2118, 1.442695
    %v2120 = vpow.pop %v2119
    %vm2121 = vcmp.eq.f32.partialorder %v2120, 1.0
    %v2122 = vsel %vm2121, 2.7182817, %v2120
    %v2123 = vlog2.pop %v2122
    %v2124 = vmul.f32 %v2123, 0.6931472
    %v2125 = vsub.f32 %v2120, 1.0
    %v2126 = vmul.f32 %v2125, %v2118
    %v2127 = vrcp.pop %v2124
    %v2128 = vmul.f32 %v2126, %v2127
    %v2129 = vsel %vm2121, %v2118, %v2128
    %vm2130 = vcmp.gt.f32.partialorder %v2116, 0.0
    %v2131 = vsel %vm2130, %v2116, %v2129
    %2132 = vst [vmem:[#allocation3] sm:$0x3] %v2131
    %v2135 = vunpack.c.l.s4 1983009808
    %v2136 = vunpack.c.0.s8 %v2135
    %v2137 = vlaneseq
    %v2138 = vshrl.u32 %v2137, 7
    %v2139 = vsub.s32 %v2136, %v2138
    %v2140 = vrot.slane %v2131, %v2139
    %v2141 = vcombine.high %v2140, %v2140
    %2143 = vst [vmem:[#allocation3 + $0x2] sm:$0x3] %v2141
    %v2144 = vcombine.high %v2131, %v2131
    %v2146 = vunpack.c.l.s4 1983009808
    %v2147 = vunpack.c.0.s8 %v2146
    %v2148 = vlaneseq
    %v2149 = vshrl.u32 %v2148, 7
    %v2150 = vsub.s32 %v2147, %v2149
    %v2151 = vrot.slane %v2144, %v2150
    %2153 = vst [vmem:[#allocation3 + $0x4] sm:$0x3] %v2151
    %v2154 = vcombine.high %v2151, %v2151
    %2156 = vst [vmem:[#allocation3 + $0x6] sm:$0x3] %v2154
    %v2157 = vld [vmem:[#allocation3] sm:$0xff]
    %v2159 = vcombine.high %v2157, %v2157
    %v2161 = vunpack.c.l.s4 1983009808
    %v2162 = vunpack.c.0.s8 %v2161
    %v2163 = vlaneseq
    %v2164 = vshrl.u32 %v2163, 7
    %v2165 = vsub.s32 %v2162, %v2164
    %v2166 = vrot.slane %v2157, %v2165
    %v2168 = vunpack.c.l.s4 1983009808
    %v2169 = vunpack.c.0.s8 %v2168
    %v2170 = vlaneseq
    %v2171 = vshrl.u32 %v2170, 7
    %v2172 = vsub.s32 %v2169, %v2171
    %v2173 = vrot.slane %v2159, %v2172
    %v2174 = vcombine.high %v2166, %v2166
    %v2175 = vcombine.high %v2173, %v2173
    %v2180 = vpack.c.bf16 %v2166, %v2166
    %v2181 = vpack.c.bf16 %v2174, %v2174
    %v2182 = vpack.c.bf16 %v2173, %v2173
    %v2183 = vpack.c.bf16 %v2175, %v2175
    %v2184 = vld [vmem:[#allocation10] sm:$0xf]
    %v2185 = vld [vmem:[#allocation10 + $0x4] sm:$0xf]
    %v2186 = vld [vmem:[#allocation10 + $0x8] sm:$0xf]
    %v2187 = vld [vmem:[#allocation10 + $0xc] sm:$0xf]
    %v2188 = vld [vmem:[#allocation10 + $0x10] sm:$0xf]
    %v2189 = vld [vmem:[#allocation10 + $0x14] sm:$0xf]
    %v2190 = vld [vmem:[#allocation10 + $0x18] sm:$0xf]
    %v2191 = vld [vmem:[#allocation10 + $0x1c] sm:$0xf]
    %v2192 = vld [vmem:[#allocation10 + $0x20] sm:$0xf]
    %v2193 = vld [vmem:[#allocation10 + $0x24] sm:$0xf]
    %v2194 = vld [vmem:[#allocation10 + $0x28] sm:$0xf]
    %v2195 = vld [vmem:[#allocation10 + $0x2c] sm:$0xf]
    %v2196 = vld [vmem:[#allocation10 + $0x30] sm:$0xf]
    %v2197 = vld [vmem:[#allocation10 + $0x34] sm:$0xf]
    %v2198 = vld [vmem:[#allocation10 + $0x38] sm:$0xf]
    %v2199 = vld [vmem:[#allocation10 + $0x3c] sm:$0xf]
    %v2200 = vld [vmem:[#allocation10 + $0x40] sm:$0xf]
    %v2201 = vld [vmem:[#allocation10 + $0x44] sm:$0xf]
    %v2202 = vld [vmem:[#allocation10 + $0x48] sm:$0xf]
    %v2203 = vld [vmem:[#allocation10 + $0x4c] sm:$0xf]
    %v2204 = vld [vmem:[#allocation10 + $0x50] sm:$0xf]
    %v2205 = vld [vmem:[#allocation10 + $0x54] sm:$0xf]
    %v2206 = vld [vmem:[#allocation10 + $0x58] sm:$0xf]
    %v2207 = vld [vmem:[#allocation10 + $0x5c] sm:$0xf]
    %v2208 = vld [vmem:[#allocation10 + $0x60] sm:$0xf]
    %v2209 = vld [vmem:[#allocation10 + $0x64] sm:$0xf]
    %v2210 = vld [vmem:[#allocation10 + $0x68] sm:$0xf]
    %v2211 = vld [vmem:[#allocation10 + $0x6c] sm:$0xf]
    %v2212 = vld [vmem:[#allocation10 + $0x70] sm:$0xf]
    %v2213 = vld [vmem:[#allocation10 + $0x74] sm:$0xf]
    %v2214 = vld [vmem:[#allocation10 + $0x78] sm:$0xf]
    %v2215 = vld [vmem:[#allocation10 + $0x7c] sm:$0xf]
    %v2216 = vld [vmem:[#allocation10 + $0x80] sm:$0xf]
    %v2217 = vld [vmem:[#allocation10 + $0x84] sm:$0xf]
    %v2218 = vld [vmem:[#allocation10 + $0x88] sm:$0xf]
    %v2219 = vld [vmem:[#allocation10 + $0x8c] sm:$0xf]
    %v2220 = vld [vmem:[#allocation10 + $0x90] sm:$0xf]
    %v2221 = vld [vmem:[#allocation10 + $0x94] sm:$0xf]
    %v2222 = vld [vmem:[#allocation10 + $0x98] sm:$0xf]
    %v2223 = vld [vmem:[#allocation10 + $0x9c] sm:$0xf]
    %v2224 = vld [vmem:[#allocation10 + $0xa0] sm:$0xf]
    %v2225 = vld [vmem:[#allocation10 + $0xa4] sm:$0xf]
    %v2226 = vld [vmem:[#allocation10 + $0xa8] sm:$0xf]
    %v2227 = vld [vmem:[#allocation10 + $0xac] sm:$0xf]
    %v2228 = vld [vmem:[#allocation10 + $0xb0] sm:$0xf]
    %v2229 = vld [vmem:[#allocation10 + $0xb4] sm:$0xf]
    %v2230 = vld [vmem:[#allocation10 + $0xb8] sm:$0xf]
    %v2231 = vld [vmem:[#allocation10 + $0xbc] sm:$0xf]
    %v2232 = vld [vmem:[#allocation10 + $0xc0] sm:$0xf]
    %v2233 = vld [vmem:[#allocation10 + $0xc4] sm:$0xf]
    %v2234 = vld [vmem:[#allocation10 + $0xc8] sm:$0xf]
    %v2235 = vld [vmem:[#allocation10 + $0xcc] sm:$0xf]
    %v2236 = vld [vmem:[#allocation10 + $0xd0] sm:$0xf]
    %v2237 = vld [vmem:[#allocation10 + $0xd4] sm:$0xf]
    %v2238 = vld [vmem:[#allocation10 + $0xd8] sm:$0xf]
    %v2239 = vld [vmem:[#allocation10 + $0xdc] sm:$0xf]
    %v2240 = vld [vmem:[#allocation10 + $0xe0] sm:$0xf]
    %v2241 = vld [vmem:[#allocation10 + $0xe4] sm:$0xf]
    %v2242 = vld [vmem:[#allocation10 + $0xe8] sm:$0xf]
    %v2243 = vld [vmem:[#allocation10 + $0xec] sm:$0xf]
    %v2244 = vld [vmem:[#allocation10 + $0xf0] sm:$0xf]
    %v2245 = vld [vmem:[#allocation10 + $0xf4] sm:$0xf]
    %v2246 = vld [vmem:[#allocation10 + $0xf8] sm:$0xf]
    %v2247 = vld [vmem:[#allocation10 + $0xfc] sm:$0xf]
    %v2248 = vld [vmem:[%s9] sm:$0x1]
    %v2250 = vlaneseq
    %v2251 = vshrl.u32 %v2250, 7
    %v2252 = vsub.s32 0, %v2251
    %v2253 = vrot.slane %v2248, %v2252
    %v2319 = vunpack.c.l.b16 %v2184
    %v2320 = vunpack.c.l.b16 %v2185
    %v2321 = vunpack.c.l.b16 %v2186
    %v2322 = vunpack.c.l.b16 %v2187
    %v2323 = vunpack.c.l.b16 %v2188
    %v2324 = vunpack.c.l.b16 %v2189
    %v2325 = vunpack.c.l.b16 %v2190
    %v2326 = vunpack.c.l.b16 %v2191
    %v2327 = vunpack.c.l.b16 %v2192
    %v2328 = vunpack.c.l.b16 %v2193
    %v2329 = vunpack.c.l.b16 %v2194
    %v2330 = vunpack.c.l.b16 %v2195
    %v2331 = vunpack.c.l.b16 %v2196
    %v2332 = vunpack.c.l.b16 %v2197
    %v2333 = vunpack.c.l.b16 %v2198
    %v2334 = vunpack.c.l.b16 %v2199
    %v2335 = vunpack.c.l.b16 %v2200
    %v2336 = vunpack.c.l.b16 %v2201
    %v2337 = vunpack.c.l.b16 %v2202
    %v2338 = vunpack.c.l.b16 %v2203
    %v2339 = vunpack.c.l.b16 %v2204
    %v2340 = vunpack.c.l.b16 %v2205
    %v2341 = vunpack.c.l.b16 %v2206
    %v2342 = vunpack.c.l.b16 %v2207
    %v2343 = vunpack.c.l.b16 %v2208
    %v2344 = vunpack.c.l.b16 %v2209
    %v2345 = vunpack.c.l.b16 %v2210
    %v2346 = vunpack.c.l.b16 %v2211
    %v2347 = vunpack.c.l.b16 %v2212
    %v2348 = vunpack.c.l.b16 %v2213
    %v2349 = vunpack.c.l.b16 %v2214
    %v2350 = vunpack.c.l.b16 %v2215
    %v2351 = vunpack.c.l.b16 %v2216
    %v2352 = vunpack.c.l.b16 %v2217
    %v2353 = vunpack.c.l.b16 %v2218
    %v2354 = vunpack.c.l.b16 %v2219
    %v2355 = vunpack.c.l.b16 %v2220
    %v2356 = vunpack.c.l.b16 %v2221
    %v2357 = vunpack.c.l.b16 %v2222
    %v2358 = vunpack.c.l.b16 %v2223
    %v2359 = vunpack.c.l.b16 %v2224
    %v2360 = vunpack.c.l.b16 %v2225
    %v2361 = vunpack.c.l.b16 %v2226
    %v2362 = vunpack.c.l.b16 %v2227
    %v2363 = vunpack.c.l.b16 %v2228
    %v2364 = vunpack.c.l.b16 %v2229
    %v2365 = vunpack.c.l.b16 %v2230
    %v2366 = vunpack.c.l.b16 %v2231
    %v2367 = vunpack.c.l.b16 %v2232
    %v2368 = vunpack.c.l.b16 %v2233
    %v2369 = vunpack.c.l.b16 %v2234
    %v2370 = vunpack.c.l.b16 %v2235
    %v2371 = vunpack.c.l.b16 %v2236
    %v2372 = vunpack.c.l.b16 %v2237
    %v2373 = vunpack.c.l.b16 %v2238
    %v2374 = vunpack.c.l.b16 %v2239
    %v2375 = vunpack.c.l.b16 %v2240
    %v2376 = vunpack.c.l.b16 %v2241
    %v2377 = vunpack.c.l.b16 %v2242
    %v2378 = vunpack.c.l.b16 %v2243
    %v2379 = vunpack.c.l.b16 %v2244
    %v2380 = vunpack.c.l.b16 %v2245
    %v2381 = vunpack.c.l.b16 %v2246
    %v2382 = vunpack.c.l.b16 %v2247
    %v2383 = vpack.c.b16 %v2320, %v2319
    %v2384 = vpack.c.b16 %v2322, %v2321
    %v2385 = vpack.c.b16 %v2324, %v2323
    %v2386 = vpack.c.b16 %v2326, %v2325
    %v2387 = vpack.c.b16 %v2328, %v2327
    %v2388 = vpack.c.b16 %v2330, %v2329
    %v2389 = vpack.c.b16 %v2332, %v2331
    %v2390 = vpack.c.b16 %v2334, %v2333
    %v2391 = vpack.c.b16 %v2336, %v2335
    %v2392 = vpack.c.b16 %v2338, %v2337
    %v2393 = vpack.c.b16 %v2340, %v2339
    %v2394 = vpack.c.b16 %v2342, %v2341
    %v2395 = vpack.c.b16 %v2344, %v2343
    %v2396 = vpack.c.b16 %v2346, %v2345
    %v2397 = vpack.c.b16 %v2348, %v2347
    %v2398 = vpack.c.b16 %v2350, %v2349
    %v2399 = vpack.c.b16 %v2352, %v2351
    %v2400 = vpack.c.b16 %v2354, %v2353
    %v2401 = vpack.c.b16 %v2356, %v2355
    %v2402 = vpack.c.b16 %v2358, %v2357
    %v2403 = vpack.c.b16 %v2360, %v2359
    %v2404 = vpack.c.b16 %v2362, %v2361
    %v2405 = vpack.c.b16 %v2364, %v2363
    %v2406 = vpack.c.b16 %v2366, %v2365
    %v2407 = vpack.c.b16 %v2368, %v2367
    %v2408 = vpack.c.b16 %v2370, %v2369
    %v2409 = vpack.c.b16 %v2372, %v2371
    %v2410 = vpack.c.b16 %v2374, %v2373
    %v2411 = vpack.c.b16 %v2376, %v2375
    %v2412 = vpack.c.b16 %v2378, %v2377
    %v2413 = vpack.c.b16 %v2380, %v2379
    %v2414 = vpack.c.b16 %v2382, %v2381
    %2447 = vmatprep.subr.bf16.mxu0 0
    %2448 = vmatpush1.bf16.msra.mxu0 %v2390
    %2449 = vmatprep.subr.bf16.mxu0 0
    %2450 = vmatpush1.bf16.msra.mxu0 %v2389
    %2451 = vmatprep.subr.bf16.mxu0 0
    %2452 = vmatpush1.bf16.msra.mxu0 %v2388
    %2453 = vmatprep.subr.bf16.mxu0 0
    %2454 = vmatpush1.bf16.msra.mxu0 %v2387
    %2455 = vmatprep.subr.bf16.mxu0 0
    %2456 = vmatpush1.bf16.msra.mxu0 %v2386
    %2457 = vmatprep.subr.bf16.mxu0 0
    %2458 = vmatpush1.bf16.msra.mxu0 %v2385
    %2459 = vmatprep.subr.bf16.mxu0 0
    %2460 = vmatpush1.bf16.msra.mxu0 %v2384
    %2461 = vmatprep.subr.bf16.mxu0 0
    %2462 = vmatpush1.bf16.msra.mxu0 %v2383
    %2463 = vmatprep.subr.bf16.mxu0 0
    %2464 = vmatpush2.bf16.msra.mxu0 %v2398
    %2465 = vmatprep.subr.bf16.mxu0 0
    %2466 = vmatpush2.bf16.msra.mxu0 %v2397
    %2467 = vmatprep.subr.bf16.mxu0 0
    %2468 = vmatpush2.bf16.msra.mxu0 %v2396
    %2469 = vmatprep.subr.bf16.mxu0 0
    %2470 = vmatpush2.bf16.msra.mxu0 %v2395
    %2471 = vmatprep.subr.bf16.mxu0 0
    %2472 = vmatpush2.bf16.msra.mxu0 %v2394
    %2473 = vmatprep.subr.bf16.mxu0 0
    %2474 = vmatpush2.bf16.msra.mxu0 %v2393
    %2475 = vmatprep.subr.bf16.mxu0 0
    %2476 = vmatpush2.bf16.msra.mxu0 %v2392
    %2477 = vmatprep.subr.bf16.mxu0 0
    %2478 = vmatpush2.bf16.msra.mxu0 %v2391
    %2479 = vmatprep.mubr.bf16.mxu0 %v2181
    %2480 = vmatmul.mubr.bf16.gmra.mxu0 %v2180
    %v2481 = vpop.f32.mrf.mxu0
    %v2482 = vadd.f32 %v2253, %v2481
    %v2483 = vpop.f32.mrf.mxu0
    %v2484 = vpop.f32.mrf.mxu0
    %v2485 = vpop.f32.mrf.mxu0
    %2486 = vdwg.mxu0
    %2487 = vmatprep.subr.bf16.mxu0 0
    %2488 = vmatpush1.bf16.msra.mxu0 %v2406
    %2489 = vmatprep.subr.bf16.mxu0 0
    %2490 = vmatpush1.bf16.msra.mxu0 %v2405
    %2491 = vmatprep.subr.bf16.mxu0 0
    %2492 = vmatpush1.bf16.msra.mxu0 %v2404
    %2493 = vmatprep.subr.bf16.mxu0 0
    %2494 = vmatpush1.bf16.msra.mxu0 %v2403
    %2495 = vmatprep.subr.bf16.mxu0 0
    %2496 = vmatpush1.bf16.msra.mxu0 %v2402
    %2497 = vmatprep.subr.bf16.mxu0 0
    %2498 = vmatpush1.bf16.msra.mxu0 %v2401
    %2499 = vmatprep.subr.bf16.mxu0 0
    %2500 = vmatpush1.bf16.msra.mxu0 %v2400
    %2501 = vmatprep.subr.bf16.mxu0 0
    %2502 = vmatpush1.bf16.msra.mxu0 %v2399
    %2503 = vmatprep.subr.bf16.mxu0 0
    %2504 = vmatpush2.bf16.msra.mxu0 %v2414
    %2505 = vmatprep.subr.bf16.mxu0 0
    %2506 = vmatpush2.bf16.msra.mxu0 %v2413
    %2507 = vmatprep.subr.bf16.mxu0 0
    %2508 = vmatpush2.bf16.msra.mxu0 %v2412
    %2509 = vmatprep.subr.bf16.mxu0 0
    %2510 = vmatpush2.bf16.msra.mxu0 %v2411
    %2511 = vmatprep.subr.bf16.mxu0 0
    %2512 = vmatpush2.bf16.msra.mxu0 %v2410
    %2513 = vmatprep.subr.bf16.mxu0 0
    %2514 = vmatpush2.bf16.msra.mxu0 %v2409
    %2515 = vmatprep.subr.bf16.mxu0 0
    %2516 = vmatpush2.bf16.msra.mxu0 %v2408
    %2517 = vmatprep.subr.bf16.mxu0 0
    %2518 = vmatpush2.bf16.msra.mxu0 %v2407
    %2519 = vmatprep.mubr.bf16.mxu0 %v2183
    %2520 = vmatmul.mubr.bf16.gmra.mxu0 %v2182
    %v2521 = vpop.f32.mrf.mxu0
    %v2522 = vadd.f32 %v2482, %v2521
    %v2523 = vpop.f32.mrf.mxu0
    %v2524 = vpop.f32.mrf.mxu0
    %v2525 = vpop.f32.mrf.mxu0
    %2526 = vdwg.mxu0
    %2527 = vst [vmem:[#allocation12] sm:$0x3] %v2522
    // Predicated region
    $region58: #{forward.1} parent=1 // pred_check
      _
    $region59: #{forward.1} parent=1 // pred_check_branch
      %2529 = sbr.rel (0) target = $region61
    $region60: #{forward.1} parent=1 // pred_region
      %s2531 = ssub.s32 32, 32
      %2532 = vsyncadd [#allocation6], %s2531
      %s2534 = sshll.u32 [#allocation12], 4
      %s2535 = int_to_ptr.vmem [resolvable:$true] %s2534
      %2537 = dma.vmem_to_hbm [thread:$0]  %s2535, 32, %s10, [#allocation6]
    $region61: #{forward.1} parent=1 // pred_fallthru
      _
    // Predicated region
    $region62: #{forward.1} parent=1 // pred_check
      _
    $region63: #{forward.1} parent=1 // pred_check_branch
      %2539 = sbr.rel (0) target = $region65
    $region64: #{forward.1} parent=1 // pred_region
      %2540 = dma.done [#allocation6], 32
    $region65: #{forward.1} parent=1 // pred_fallthru
      _
    %2541 = vsyncpa [#allocation5], 1
    %2542 = vsyncpa [#allocation8], 1
    %2543 = vsyncpa [#allocation11], 1
    %2544 = vsyncpa [#allocation6], 1

</llo_original>
